<compile_context>
chip_gen: v7x
topology: tpu7x:2x2x1
jax: 0.10.0
libtpu: 0.0.40
codegen_flags: <defaults>
</compile_context>

<pallas_src>
import jax
import jax.numpy as jnp
from jax.experimental import pallas as pl
from jax.experimental.pallas import tpu as pltpu

LANE = 128


def _round_up(x, m):
    return ((x + m - 1) // m) * m


def _cdiv(a, b):
    return (a + b - 1) // b


def ae11_kernel(x_ref, *refs):
    (w1, b1, w2, b2, w3, b3, w4, b4,       # encoder
     w5, b5, w6, b6, w7, b7, w8, b8,       # decoder
     out_ref) = refs

    def linear(h, w_ref, b_ref, relu):
        # MXU matmul with f32 accumulation; bias add / ReLU stay f32 on the VPU
        # (v5e has no bf16 VPU).  h is cast to the weight dtype (bf16 path).
        y = jnp.dot(h.astype(w_ref.dtype), w_ref[...],
                    preferred_element_type=jnp.float32) + b_ref[...]
        return jnp.maximum(y, 0.0) if relu else y

    h = x_ref[...]

    # ---- encoder: Linear+ReLU x3, then Linear (no activation) ----
    h = linear(h, w1, b1, True)
    h = linear(h, w2, b2, True)
    h = linear(h, w3, b3, True)
    # w4/b4 are zero-padded to the full packed width -> en_slab is (tb, out_pad)
    # with `en` in lanes [0:latent] and exact zeros elsewhere.
    en_slab = linear(h, w4, b4, False)

    # ---- decoder: Linear+ReLU x3, then Linear (no activation) ----
    # w5's input dim is zero-padded to out_pad, so en_slab's padded lanes
    # contribute nothing.
    d = linear(en_slab, w5, b5, True)
    d = linear(d, w6, b6, True)
    d = linear(d, w7, b7, True)
    # w8/b8 columns are placed at lanes [latent:latent+n_in] of the packed
    # width -> de_slab has `de` there and exact zeros elsewhere.
    de_slab = linear(d, w8, b8, False)

    # Single lane-dense, unmasked writeback of both outputs.
    out_ref[...] = en_slab + de_slab


def autoencoder11_forward(x, params, *, tb_target=1024, compute_dtype=jnp.bfloat16):
    """params: 8 tuples of PyTorch-layout (W: (out, in), b: (out,)).

    Returns (en, de) with shapes (B, latent) and (B, n_in), both float32.
    """
    B, n_in = x.shape
    latent = params[3][0].shape[0]
    out_pad = _round_up(latent + n_in, LANE)          # packed en|de slab width

    # --- kernel layout: W -> (in, out) f32, b -> (1, out) f32 ---
    kw = [jnp.asarray(w, jnp.float32).T for w, _ in params]
    kb = [jnp.asarray(b, jnp.float32).reshape(1, -1) for _, b in params]

    # --- pack en|de into one lane-dense slab ---
    # encoder layer 4 -> lanes [0:latent]; decoder layer 8 -> lanes [latent:latent+n_in]
    kw[3] = jnp.pad(kw[3], ((0, 0), (0, out_pad - latent)))
    kb[3] = jnp.pad(kb[3], ((0, 0), (0, out_pad - latent)))
    kw[4] = jnp.pad(kw[4], ((0, out_pad - latent), (0, 0)))   # decoder l1 consumes padded slab
    kw[7] = jnp.pad(kw[7], ((0, 0), (latent, out_pad - latent - n_in)))
    kb[7] = jnp.pad(kb[7], ((0, 0), (latent, out_pad - latent - n_in)))

    # bf16 weights/activations on the matmul path (f32 accumulation kept).
    kw = [w.astype(compute_dtype) for w in kw]
    x_in = x.astype(compute_dtype)

    flat = []
    for w, b in zip(kw, kb):
        flat.extend([w, b])

    # --- batch tiling ---
    # sublane multiple follows packed-dtype tiling: f32 -> 8, bf16 -> 16, int8/fp8 -> 32
    sub = {4: 8, 2: 16, 1: 32}[jnp.dtype(compute_dtype).itemsize]
    b_sub = _round_up(B, sub)
    tb = min(_round_up(tb_target, sub), b_sub)
    # Prefer >= 2 grid blocks so v7x's two TensorCores both get work.
    if b_sub // tb < 2 and b_sub >= 2 * sub:
        tb = _round_up(_cdiv(b_sub, 2), sub)
    b_pad = _round_up(b_sub, tb)
    if b_pad != B:
        x_in = jnp.pad(x_in, ((0, b_pad - B), (0, 0)))
    grid = (b_pad // tb,)

    # --- generation-aware VMEM limit: 64 MiB on v5e/v6e (128 MiB phys), 32 MiB on v7x ---
    vmem_limit = 32 * 1024 * 1024
    try:
        cap = getattr(pltpu.get_tpu_info(), "vmem_capacity_bytes", None)
        if cap:
            vmem_limit = min(64 * 1024 * 1024, cap // 2)
    except Exception:
        pass

    # --- cost estimate for the XLA scheduler ---
    flops = 2 * b_pad * sum(w.shape[0] * w.shape[1] for w in kw)
    bytes_accessed = (b_pad * n_in * jnp.dtype(compute_dtype).itemsize      # x in
                      + b_pad * out_pad * 4                                  # packed out
                      + sum(a.size * a.dtype.itemsize for a in flat))        # one-time weights
    cost = pl.CostEstimate(flops=flops, transcendentals=0,
                           bytes_accessed=bytes_accessed)

    x_spec = pl.BlockSpec((tb, n_in), lambda i: (i, 0))
    # Constant block index => weights/biases DMA'd once and stay VMEM-resident.
    w_specs = [pl.BlockSpec(a.shape, lambda i: (0, 0)) for a in flat]
    out_spec = pl.BlockSpec((tb, out_pad), lambda i: (i, 0))

    packed = pl.pallas_call(
        ae11_kernel,
        grid=grid,
        in_specs=[x_spec] + w_specs,
        out_specs=out_spec,
        out_shape=jax.ShapeDtypeStruct((b_pad, out_pad), jnp.float32),
        compiler_params=pltpu.CompilerParams(
            dimension_semantics=("parallel",),
            vmem_limit_bytes=vmem_limit,
        ),
        cost_estimate=cost,
    )(x_in, *flat)

    return packed[:B, :latent], packed[:B, latent:latent + n_in]


def make_params(key, n_in, encoder_units):
    """PyTorch-style init: W (out, in), b (out,), U(-1/sqrt(fan_in), 1/sqrt(fan_in))."""
    enc = encoder_units
    dec = list(reversed(encoder_units))
    dims = [
        (n_in, enc[0]), (enc[0], enc[1]), (enc[1], enc[2]), (enc[2], enc[3]),   # encoder
        (dec[0], dec[1]), (dec[1], dec[2]), (dec[2], dec[3]), (dec[3], n_in),   # decoder
    ]
    params = []
    for fan_in, fan_out in dims:
        key, k_w, k_b = jax.random.split(key, 3)
        bound = 1.0 / float(fan_in) ** 0.5
        w = jax.random.uniform(k_w, (fan_out, fan_in), jnp.float32, -bound, bound)
        b = jax.random.uniform(k_b, (fan_out,), jnp.float32, -bound, bound)
        params.append((w, b))
    return params


def reference_forward(x, params, compute_dtype=jnp.float32):
    """Pure-JAX reference; compute_dtype mimics the kernel's bf16 matmul inputs
    with f32 accumulation when set to bfloat16."""
    def lin(h, w, b, relu):
        y = jnp.dot(h.astype(compute_dtype),
                    jnp.asarray(w, jnp.float32).T.astype(compute_dtype),
                    preferred_element_type=jnp.float32) + jnp.asarray(b, jnp.float32)
        return jnp.maximum(y, 0.0) if relu else y

    h = x
    for i, (w, b) in enumerate(params[:4]):
        h = lin(h, w, b, i < 3)
    en = h
    d = en
    for i, (w, b) in enumerate(params[4:]):
        d = lin(d, w, b, i < 3)
    return en, d


if __name__ == "__main__":
    key = jax.random.PRNGKey(0)
    kx, kp = jax.random.split(key)

    B = 300                      # exercises >=2 grid blocks + a padded tail block
    n_in = 32
    encoder_units = [128, 64, 32, 16]

    x = jax.random.normal(kx, (B, n_in), jnp.float32)
    params = make_params(kp, n_in, encoder_units)

    # Default path: bf16 matmul inputs, >=2 blocks, packed en|de writeback.
    en, de = autoencoder11_forward(x, params)
    en, de = jax.block_until_ready((en, de))

    # Smaller tile to exercise several pipelined grid steps.
    en2, de2 = autoencoder11_forward(x, params, tb_target=64)
    en2, de2 = jax.block_until_ready((en2, de2))

    en_q, de_q = reference_forward(x, params, compute_dtype=jnp.bfloat16)
    en_f, de_f = reference_forward(x, params, compute_dtype=jnp.float32)

    assert en.shape == (B, encoder_units[-1]) and de.shape == (B, n_in)
    # vs matching (bf16-input, f32-accumulate) reference: tight tolerance
    assert jnp.allclose(en, en_q, atol=5e-3, rtol=5e-3)
    assert jnp.allclose(de, de_q, atol=5e-3, rtol=5e-3)
    assert jnp.allclose(en2, en_q, atol=5e-3, rtol=5e-3)
    assert jnp.allclose(de2, de_q, atol=5e-3, rtol=5e-3)
    # vs full-f32 reference: loose tolerance (bf16 quantization error only)
    assert jnp.allclose(en, en_f, atol=1e-1, rtol=1e-1)
    assert jnp.allclose(de, de_f, atol=1e-1, rtol=1e-1)

    print("KERNEL_OK")
</pallas_src>

<mosaic_0001>
module attributes {stable_mosaic.version = 11 : i64} {
  func.func @ae11_kernel(%arg0: i32, %arg1: memref<160x32xbf16, #tpu.memory_space<vmem>>, %arg2: memref<32x128xbf16, #tpu.memory_space<vmem>>, %arg3: memref<1x128xf32, #tpu.memory_space<vmem>>, %arg4: memref<128x64xbf16, #tpu.memory_space<vmem>>, %arg5: memref<1x64xf32, #tpu.memory_space<vmem>>, %arg6: memref<64x32xbf16, #tpu.memory_space<vmem>>, %arg7: memref<1x32xf32, #tpu.memory_space<vmem>>, %arg8: memref<32x128xbf16, #tpu.memory_space<vmem>>, %arg9: memref<1x128xf32, #tpu.memory_space<vmem>>, %arg10: memref<128x32xbf16, #tpu.memory_space<vmem>>, %arg11: memref<1x32xf32, #tpu.memory_space<vmem>>, %arg12: memref<32x64xbf16, #tpu.memory_space<vmem>>, %arg13: memref<1x64xf32, #tpu.memory_space<vmem>>, %arg14: memref<64x128xbf16, #tpu.memory_space<vmem>>, %arg15: memref<1x128xf32, #tpu.memory_space<vmem>>, %arg16: memref<128x128xbf16, #tpu.memory_space<vmem>>, %arg17: memref<1x128xf32, #tpu.memory_space<vmem>>, %arg18: memref<160x128xf32, #tpu.memory_space<vmem>>) attributes {dimension_semantics = [#tpu.dimension_semantics<parallel>], iteration_bounds = array<i64: 2>, scalar_prefetch = 0 : i64, scratch_operands = 0 : i64, tpu.core_type = #tpu.core_type<tc>, window_params = [{transform_indices = @transform_0, window_bounds = array<i64: 160, 32>}, {pipeline_mode = #tpu.pipeline_mode<synchronous>, transform_indices = @transform_1, window_bounds = array<i64: 32, 128>}, {pipeline_mode = #tpu.pipeline_mode<synchronous>, transform_indices = @transform_2, window_bounds = array<i64: 1, 128>}, {pipeline_mode = #tpu.pipeline_mode<synchronous>, transform_indices = @transform_3, window_bounds = array<i64: 128, 64>}, {pipeline_mode = #tpu.pipeline_mode<synchronous>, transform_indices = @transform_4, window_bounds = array<i64: 1, 64>}, {pipeline_mode = #tpu.pipeline_mode<synchronous>, transform_indices = @transform_5, window_bounds = array<i64: 64, 32>}, {pipeline_mode = #tpu.pipeline_mode<synchronous>, transform_indices = @transform_6, window_bounds = array<i64: 1, 32>}, {pipeline_mode = #tpu.pipeline_mode<synchronous>, transform_indices = @transform_7, window_bounds = array<i64: 32, 128>}, {pipeline_mode = #tpu.pipeline_mode<synchronous>, transform_indices = @transform_8, window_bounds = array<i64: 1, 128>}, {pipeline_mode = #tpu.pipeline_mode<synchronous>, transform_indices = @transform_9, window_bounds = array<i64: 128, 32>}, {pipeline_mode = #tpu.pipeline_mode<synchronous>, transform_indices = @transform_10, window_bounds = array<i64: 1, 32>}, {pipeline_mode = #tpu.pipeline_mode<synchronous>, transform_indices = @transform_11, window_bounds = array<i64: 32, 64>}, {pipeline_mode = #tpu.pipeline_mode<synchronous>, transform_indices = @transform_12, window_bounds = array<i64: 1, 64>}, {pipeline_mode = #tpu.pipeline_mode<synchronous>, transform_indices = @transform_13, window_bounds = array<i64: 64, 128>}, {pipeline_mode = #tpu.pipeline_mode<synchronous>, transform_indices = @transform_14, window_bounds = array<i64: 1, 128>}, {pipeline_mode = #tpu.pipeline_mode<synchronous>, transform_indices = @transform_15, window_bounds = array<i64: 128, 128>}, {pipeline_mode = #tpu.pipeline_mode<synchronous>, transform_indices = @transform_16, window_bounds = array<i64: 1, 128>}, {transform_indices = @transform_17, window_bounds = array<i64: 160, 128>}]} {
    %c0 = arith.constant 0 : index
    %c0_0 = arith.constant 0 : index
    %0 = vector.load %arg1[%c0, %c0_0] : memref<160x32xbf16, #tpu.memory_space<vmem>>, vector<160x32xbf16>
    %c0_1 = arith.constant 0 : index
    %c0_2 = arith.constant 0 : index
    %1 = vector.load %arg2[%c0_1, %c0_2] : memref<32x128xbf16, #tpu.memory_space<vmem>>, vector<32x128xbf16>
    %cst = arith.constant dense<0.000000e+00> : vector<160x128xf32>
    %2 = tpu.matmul %0, %1, %cst {dimension_numbers = #tpu.dot_dimension_numbers<[1], [0], [0], [1], [0, 0, 1, 1], [], []>} : vector<160x32xbf16>, vector<32x128xbf16>, vector<160x128xf32> -> vector<160x128xf32>
    %c0_3 = arith.constant 0 : index
    %c0_4 = arith.constant 0 : index
    %3 = vector.load %arg3[%c0_3, %c0_4] : memref<1x128xf32, #tpu.memory_space<vmem>>, vector<1x128xf32>
    %4 = vector.broadcast %3 : vector<1x128xf32> to vector<160x128xf32>
    %5 = arith.addf %2, %4 : vector<160x128xf32>
    %cst_5 = arith.constant 0.000000e+00 : f32
    %6 = vector.broadcast %cst_5 : f32 to vector<160x128xf32>
    %7 = arith.maximumf %5, %6 : vector<160x128xf32>
    %8 = arith.truncf %7 : vector<160x128xf32> to vector<160x128xbf16>
    %c0_6 = arith.constant 0 : index
    %c0_7 = arith.constant 0 : index
    %9 = vector.load %arg4[%c0_6, %c0_7] : memref<128x64xbf16, #tpu.memory_space<vmem>>, vector<128x64xbf16>
    %cst_8 = arith.constant dense<0.000000e+00> : vector<160x64xf32>
    %10 = tpu.matmul %8, %9, %cst_8 {dimension_numbers = #tpu.dot_dimension_numbers<[1], [0], [0], [1], [0, 0, 1, 1], [], []>} : vector<160x128xbf16>, vector<128x64xbf16>, vector<160x64xf32> -> vector<160x64xf32>
    %c0_9 = arith.constant 0 : index
    %c0_10 = arith.constant 0 : index
    %11 = vector.load %arg5[%c0_9, %c0_10] : memref<1x64xf32, #tpu.memory_space<vmem>>, vector<1x64xf32>
    %12 = vector.broadcast %11 : vector<1x64xf32> to vector<160x64xf32>
    %13 = arith.addf %10, %12 : vector<160x64xf32>
    %cst_11 = arith.constant 0.000000e+00 : f32
    %14 = vector.broadcast %cst_11 : f32 to vector<160x64xf32>
    %15 = arith.maximumf %13, %14 : vector<160x64xf32>
    %16 = arith.truncf %15 : vector<160x64xf32> to vector<160x64xbf16>
    %c0_12 = arith.constant 0 : index
    %c0_13 = arith.constant 0 : index
    %17 = vector.load %arg6[%c0_12, %c0_13] : memref<64x32xbf16, #tpu.memory_space<vmem>>, vector<64x32xbf16>
    %cst_14 = arith.constant dense<0.000000e+00> : vector<160x32xf32>
    %18 = tpu.matmul %16, %17, %cst_14 {dimension_numbers = #tpu.dot_dimension_numbers<[1], [0], [0], [1], [0, 0, 1, 1], [], []>} : vector<160x64xbf16>, vector<64x32xbf16>, vector<160x32xf32> -> vector<160x32xf32>
    %c0_15 = arith.constant 0 : index
    %c0_16 = arith.constant 0 : index
    %19 = vector.load %arg7[%c0_15, %c0_16] : memref<1x32xf32, #tpu.memory_space<vmem>>, vector<1x32xf32>
    %20 = vector.broadcast %19 : vector<1x32xf32> to vector<160x32xf32>
    %21 = arith.addf %18, %20 : vector<160x32xf32>
    %cst_17 = arith.constant 0.000000e+00 : f32
    %22 = vector.broadcast %cst_17 : f32 to vector<160x32xf32>
    %23 = arith.maximumf %21, %22 : vector<160x32xf32>
    %24 = arith.truncf %23 : vector<160x32xf32> to vector<160x32xbf16>
    %c0_18 = arith.constant 0 : index
    %c0_19 = arith.constant 0 : index
    %25 = vector.load %arg8[%c0_18, %c0_19] : memref<32x128xbf16, #tpu.memory_space<vmem>>, vector<32x128xbf16>
    %cst_20 = arith.constant dense<0.000000e+00> : vector<160x128xf32>
    %26 = tpu.matmul %24, %25, %cst_20 {dimension_numbers = #tpu.dot_dimension_numbers<[1], [0], [0], [1], [0, 0, 1, 1], [], []>} : vector<160x32xbf16>, vector<32x128xbf16>, vector<160x128xf32> -> vector<160x128xf32>
    %c0_21 = arith.constant 0 : index
    %c0_22 = arith.constant 0 : index
    %27 = vector.load %arg9[%c0_21, %c0_22] : memref<1x128xf32, #tpu.memory_space<vmem>>, vector<1x128xf32>
    %28 = vector.broadcast %27 : vector<1x128xf32> to vector<160x128xf32>
    %29 = arith.addf %26, %28 : vector<160x128xf32>
    %30 = arith.truncf %29 : vector<160x128xf32> to vector<160x128xbf16>
    %c0_23 = arith.constant 0 : index
    %c0_24 = arith.constant 0 : index
    %31 = vector.load %arg10[%c0_23, %c0_24] : memref<128x32xbf16, #tpu.memory_space<vmem>>, vector<128x32xbf16>
    %cst_25 = arith.constant dense<0.000000e+00> : vector<160x32xf32>
    %32 = tpu.matmul %30, %31, %cst_25 {dimension_numbers = #tpu.dot_dimension_numbers<[1], [0], [0], [1], [0, 0, 1, 1], [], []>} : vector<160x128xbf16>, vector<128x32xbf16>, vector<160x32xf32> -> vector<160x32xf32>
    %c0_26 = arith.constant 0 : index
    %c0_27 = arith.constant 0 : index
    %33 = vector.load %arg11[%c0_26, %c0_27] : memref<1x32xf32, #tpu.memory_space<vmem>>, vector<1x32xf32>
    %34 = vector.broadcast %33 : vector<1x32xf32> to vector<160x32xf32>
    %35 = arith.addf %32, %34 : vector<160x32xf32>
    %cst_28 = arith.constant 0.000000e+00 : f32
    %36 = vector.broadcast %cst_28 : f32 to vector<160x32xf32>
    %37 = arith.maximumf %35, %36 : vector<160x32xf32>
    %38 = arith.truncf %37 : vector<160x32xf32> to vector<160x32xbf16>
    %c0_29 = arith.constant 0 : index
    %c0_30 = arith.constant 0 : index
    %39 = vector.load %arg12[%c0_29, %c0_30] : memref<32x64xbf16, #tpu.memory_space<vmem>>, vector<32x64xbf16>
    %cst_31 = arith.constant dense<0.000000e+00> : vector<160x64xf32>
    %40 = tpu.matmul %38, %39, %cst_31 {dimension_numbers = #tpu.dot_dimension_numbers<[1], [0], [0], [1], [0, 0, 1, 1], [], []>} : vector<160x32xbf16>, vector<32x64xbf16>, vector<160x64xf32> -> vector<160x64xf32>
    %c0_32 = arith.constant 0 : index
    %c0_33 = arith.constant 0 : index
    %41 = vector.load %arg13[%c0_32, %c0_33] : memref<1x64xf32, #tpu.memory_space<vmem>>, vector<1x64xf32>
    %42 = vector.broadcast %41 : vector<1x64xf32> to vector<160x64xf32>
    %43 = arith.addf %40, %42 : vector<160x64xf32>
    %cst_34 = arith.constant 0.000000e+00 : f32
    %44 = vector.broadcast %cst_34 : f32 to vector<160x64xf32>
    %45 = arith.maximumf %43, %44 : vector<160x64xf32>
    %46 = arith.truncf %45 : vector<160x64xf32> to vector<160x64xbf16>
    %c0_35 = arith.constant 0 : index
    %c0_36 = arith.constant 0 : index
    %47 = vector.load %arg14[%c0_35, %c0_36] : memref<64x128xbf16, #tpu.memory_space<vmem>>, vector<64x128xbf16>
    %cst_37 = arith.constant dense<0.000000e+00> : vector<160x128xf32>
    %48 = tpu.matmul %46, %47, %cst_37 {dimension_numbers = #tpu.dot_dimension_numbers<[1], [0], [0], [1], [0, 0, 1, 1], [], []>} : vector<160x64xbf16>, vector<64x128xbf16>, vector<160x128xf32> -> vector<160x128xf32>
    %c0_38 = arith.constant 0 : index
    %c0_39 = arith.constant 0 : index
    %49 = vector.load %arg15[%c0_38, %c0_39] : memref<1x128xf32, #tpu.memory_space<vmem>>, vector<1x128xf32>
    %50 = vector.broadcast %49 : vector<1x128xf32> to vector<160x128xf32>
    %51 = arith.addf %48, %50 : vector<160x128xf32>
    %cst_40 = arith.constant 0.000000e+00 : f32
    %52 = vector.broadcast %cst_40 : f32 to vector<160x128xf32>
    %53 = arith.maximumf %51, %52 : vector<160x128xf32>
    %54 = arith.truncf %53 : vector<160x128xf32> to vector<160x128xbf16>
    %c0_41 = arith.constant 0 : index
    %c0_42 = arith.constant 0 : index
    %55 = vector.load %arg16[%c0_41, %c0_42] : memref<128x128xbf16, #tpu.memory_space<vmem>>, vector<128x128xbf16>
    %cst_43 = arith.constant dense<0.000000e+00> : vector<160x128xf32>
    %56 = tpu.matmul %54, %55, %cst_43 {dimension_numbers = #tpu.dot_dimension_numbers<[1], [0], [0], [1], [0, 0, 1, 1], [], []>} : vector<160x128xbf16>, vector<128x128xbf16>, vector<160x128xf32> -> vector<160x128xf32>
    %c0_44 = arith.constant 0 : index
    %c0_45 = arith.constant 0 : index
    %57 = vector.load %arg17[%c0_44, %c0_45] : memref<1x128xf32, #tpu.memory_space<vmem>>, vector<1x128xf32>
    %58 = vector.broadcast %57 : vector<1x128xf32> to vector<160x128xf32>
    %59 = arith.addf %56, %58 : vector<160x128xf32>
    %60 = arith.addf %29, %59 : vector<160x128xf32>
    %c0_46 = arith.constant 0 : index
    %c0_47 = arith.constant 0 : index
    %61 = vector.load %arg18[%c0_46, %c0_47] : memref<160x128xf32, #tpu.memory_space<vmem>>, vector<160x128xf32>
    tpu.vector_store %arg18[%c0_46, %c0_47], %60 {strides = array<i32>} : memref<160x128xf32, #tpu.memory_space<vmem>>, vector<160x128xf32>,
    return
  }
  func.func @transform_0(%arg0: i32) -> (i32, i32) {
    %c0_i32 = arith.constant 0 : i32
    %c0_i32_0 = arith.constant 0 : i32
    return %arg0, %c0_i32 : i32, i32
  }
  func.func @transform_1(%arg0: i32) -> (i32, i32) {
    %c0_i32 = arith.constant 0 : i32
    %c0_i32_0 = arith.constant 0 : i32
    %c0_i32_1 = arith.constant 0 : i32
    return %c0_i32, %c0_i32_0 : i32, i32
  }
  func.func @transform_2(%arg0: i32) -> (i32, i32) {
    %c0_i32 = arith.constant 0 : i32
    %c0_i32_0 = arith.constant 0 : i32
    %c0_i32_1 = arith.constant 0 : i32
    return %c0_i32, %c0_i32_0 : i32, i32
  }
  func.func @transform_3(%arg0: i32) -> (i32, i32) {
    %c0_i32 = arith.constant 0 : i32
    %c0_i32_0 = arith.constant 0 : i32
    %c0_i32_1 = arith.constant 0 : i32
    return %c0_i32, %c0_i32_0 : i32, i32
  }
  func.func @transform_4(%arg0: i32) -> (i32, i32) {
    %c0_i32 = arith.constant 0 : i32
    %c0_i32_0 = arith.constant 0 : i32
    %c0_i32_1 = arith.constant 0 : i32
    return %c0_i32, %c0_i32_0 : i32, i32
  }
  func.func @transform_5(%arg0: i32) -> (i32, i32) {
    %c0_i32 = arith.constant 0 : i32
    %c0_i32_0 = arith.constant 0 : i32
    %c0_i32_1 = arith.constant 0 : i32
    return %c0_i32, %c0_i32_0 : i32, i32
  }
  func.func @transform_6(%arg0: i32) -> (i32, i32) {
    %c0_i32 = arith.constant 0 : i32
    %c0_i32_0 = arith.constant 0 : i32
    %c0_i32_1 = arith.constant 0 : i32
    return %c0_i32, %c0_i32_0 : i32, i32
  }
  func.func @transform_7(%arg0: i32) -> (i32, i32) {
    %c0_i32 = arith.constant 0 : i32
    %c0_i32_0 = arith.constant 0 : i32
    %c0_i32_1 = arith.constant 0 : i32
    return %c0_i32, %c0_i32_0 : i32, i32
  }
  func.func @transform_8(%arg0: i32) -> (i32, i32) {
    %c0_i32 = arith.constant 0 : i32
    %c0_i32_0 = arith.constant 0 : i32
    %c0_i32_1 = arith.constant 0 : i32
    return %c0_i32, %c0_i32_0 : i32, i32
  }
  func.func @transform_9(%arg0: i32) -> (i32, i32) {
    %c0_i32 = arith.constant 0 : i32
    %c0_i32_0 = arith.constant 0 : i32
    %c0_i32_1 = arith.constant 0 : i32
    return %c0_i32, %c0_i32_0 : i32, i32
  }
  func.func @transform_10(%arg0: i32) -> (i32, i32) {
    %c0_i32 = arith.constant 0 : i32
    %c0_i32_0 = arith.constant 0 : i32
    %c0_i32_1 = arith.constant 0 : i32
    return %c0_i32, %c0_i32_0 : i32, i32
  }
  func.func @transform_11(%arg0: i32) -> (i32, i32) {
    %c0_i32 = arith.constant 0 : i32
    %c0_i32_0 = arith.constant 0 : i32
    %c0_i32_1 = arith.constant 0 : i32
    return %c0_i32, %c0_i32_0 : i32, i32
  }
  func.func @transform_12(%arg0: i32) -> (i32, i32) {
    %c0_i32 = arith.constant 0 : i32
    %c0_i32_0 = arith.constant 0 : i32
    %c0_i32_1 = arith.constant 0 : i32
    return %c0_i32, %c0_i32_0 : i32, i32
  }
  func.func @transform_13(%arg0: i32) -> (i32, i32) {
    %c0_i32 = arith.constant 0 : i32
    %c0_i32_0 = arith.constant 0 : i32
    %c0_i32_1 = arith.constant 0 : i32
    return %c0_i32, %c0_i32_0 : i32, i32
  }
  func.func @transform_14(%arg0: i32) -> (i32, i32) {
    %c0_i32 = arith.constant 0 : i32
    %c0_i32_0 = arith.constant 0 : i32
    %c0_i32_1 = arith.constant 0 : i32
    return %c0_i32, %c0_i32_0 : i32, i32
  }
  func.func @transform_15(%arg0: i32) -> (i32, i32) {
    %c0_i32 = arith.constant 0 : i32
    %c0_i32_0 = arith.constant 0 : i32
    %c0_i32_1 = arith.constant 0 : i32
    return %c0_i32, %c0_i32_0 : i32, i32
  }
  func.func @transform_16(%arg0: i32) -> (i32, i32) {
    %c0_i32 = arith.constant 0 : i32
    %c0_i32_0 = arith.constant 0 : i32
    %c0_i32_1 = arith.constant 0 : i32
    return %c0_i32, %c0_i32_0 : i32, i32
  }
  func.func @transform_17(%arg0: i32) -> (i32, i32) {
    %c0_i32 = arith.constant 0 : i32
    %c0_i32_0 = arith.constant 0 : i32
    return %arg0, %c0_i32 : i32, i32
  }
}

</mosaic_0001>

<llo_original>
// kernel: tpu_custom_call.1
$region0: #{tpu_custom_call.1}
  #allocation0 [shape = 'u32[]', space=smem, size = 0x4, offset = 0x4, fixed_abs, tag = 'smem constant byte address 0x4 - core index']
  #allocation1 [shape = 'u32[144,128]{1,0:T(1,128)}', space=vmem, size = 0x12000, scoped, tag = 'internal scratch']
  %s0 = inlined_call_operand.vmem [shape: bf16[320,32], index: 0, kind: input, shape index: {}]
  %s1 = inlined_call_operand.vmem [shape: bf16[32,128], index: 1, kind: input, shape index: {}]
  %s2 = inlined_call_operand.vmem [shape: f32[1,128], index: 2, kind: input, shape index: {}]
  %s3 = inlined_call_operand.vmem [shape: bf16[128,64], index: 3, kind: input, shape index: {}]
  %s4 = inlined_call_operand.vmem [shape: f32[1,64], index: 4, kind: input, shape index: {}]
  %s5 = inlined_call_operand.vmem [shape: bf16[64,32], index: 5, kind: input, shape index: {}]
  %s6 = inlined_call_operand.vmem [shape: f32[1,32], index: 6, kind: input, shape index: {}]
  %s7 = inlined_call_operand.vmem [shape: bf16[32,128], index: 7, kind: input, shape index: {}]
  %s8 = inlined_call_operand.vmem [shape: f32[1,128], index: 8, kind: input, shape index: {}]
  %s9 = inlined_call_operand.vmem [shape: bf16[128,32], index: 9, kind: input, shape index: {}]
  %s10 = inlined_call_operand.vmem [shape: f32[1,32], index: 10, kind: input, shape index: {}]
  %s11 = inlined_call_operand.vmem [shape: bf16[32,64], index: 11, kind: input, shape index: {}]
  %s12 = inlined_call_operand.vmem [shape: f32[1,64], index: 12, kind: input, shape index: {}]
  %s13 = inlined_call_operand.vmem [shape: bf16[64,128], index: 13, kind: input, shape index: {}]
  %s14 = inlined_call_operand.vmem [shape: f32[1,128], index: 14, kind: input, shape index: {}]
  %s15 = inlined_call_operand.vmem [shape: bf16[128,128], index: 15, kind: input, shape index: {}]
  %s16 = inlined_call_operand.vmem [shape: f32[1,128], index: 16, kind: input, shape index: {}]
  %s17 = inlined_call_operand.hbm [shape: f32[320,128], index: 17, kind: output, shape index: {}]
  %s18 = sld [smem:[#allocation0]]
  $region101: #{tpu_custom_call.1} parent=0
    _
  %s20 = ssub.s32 1, %s18
  %s21 = scalar_select 0, %s20, %s18
  $region1: #{tpu_custom_call.1} parent=0
    #allocation2 [shape = 'u8[163840]{0}', space=vmem, size = 0x28000, scoped, tag = 'output window, operand 0']
    #allocation3 [shape = 's32[2]{0}', space=sflag, size = 0x8, scoped, tag = 'scoped memory for tpu_custom_call.1']
    %22 = vsyncpa [#allocation3], 0
    %s23 = scalar_lea.sflag [#allocation3], 1
    %24 = vsyncpa %s23, 0
    loop: start=0, step=1, limit=4
    $region2: #{tpu_custom_call.1} parent=1 // loop_pre_header
      _
    $region3: #{tpu_custom_call.1} parent=1 // loop_header
      %s26 = sphi 0, %s30
      %p27 = scmp.ge.s32.totalorder %s26, 4
      %s36 = sphi 0, %s38
      %s39 = sphi 0, %s36
      %s40 = sphi 0, %s39
      %s56 = sphi 0, %s40
      %s60 = sphi 0, %s60
      %s62 = sphi 0, %s60
      %s63 = sphi 0, %s62
      %s77 = sphi 0, %s63
      %s81 = sphi 0, %s81
      %s83 = sphi 0, %s81
      %s84 = sphi 0, %s83
      %s98 = sphi 0, %s84
      %s102 = sphi 0, %s102
      %s104 = sphi 0, %s102
      %s105 = sphi 0, %s104
      %s119 = sphi 0, %s105
      %s123 = sphi 0, %s123
      %s125 = sphi 0, %s123
      %s126 = sphi 0, %s125
      %s140 = sphi 0, %s126
      %s144 = sphi 0, %s144
      %s146 = sphi 0, %s144
      %s147 = sphi 0, %s146
      %s161 = sphi 0, %s147
      %s165 = sphi 0, %s165
      %s167 = sphi 0, %s165
      %s168 = sphi 0, %s167
      %s182 = sphi 0, %s168
      %s186 = sphi 0, %s186
      %s188 = sphi 0, %s186
      %s189 = sphi 0, %s188
      %s203 = sphi 0, %s189
      %s207 = sphi 0, %s207
      %s209 = sphi 0, %s207
      %s210 = sphi 0, %s209
      %s224 = sphi 0, %s210
      %s228 = sphi 0, %s228
      %s230 = sphi 0, %s228
      %s231 = sphi 0, %s230
      %s245 = sphi 0, %s231
      %s249 = sphi 0, %s249
      %s251 = sphi 0, %s249
      %s252 = sphi 0, %s251
      %s266 = sphi 0, %s252
      %s270 = sphi 0, %s270
      %s272 = sphi 0, %s270
      %s273 = sphi 0, %s272
      %s287 = sphi 0, %s273
      %s291 = sphi 0, %s291
      %s293 = sphi 0, %s291
      %s294 = sphi 0, %s293
      %s308 = sphi 0, %s294
      %s312 = sphi 0, %s312
      %s314 = sphi 0, %s312
      %s315 = sphi 0, %s314
      %s329 = sphi 0, %s315
      %s333 = sphi 0, %s333
      %s335 = sphi 0, %s333
      %s336 = sphi 0, %s335
      %s350 = sphi 0, %s336
      %s354 = sphi 0, %s354
      %s356 = sphi 0, %s354
      %s357 = sphi 0, %s356
      %s371 = sphi 0, %s357
      %s375 = sphi 0, %s375
      %s377 = sphi 0, %s375
      %s378 = sphi 0, %s377
      %s392 = sphi 0, %s378
      %s398 = sphi 0, %s400
      %s401 = sphi 0, %s398
      %s402 = sphi 0, %s401
      %s418 = sphi 0, %s402
    $region4: #{tpu_custom_call.1} parent=1 // loop_header_branch
      %29 = sbr.rel (%p27) target = $region8
    $region5: #{tpu_custom_call.1} parent=1 // loop_body
      %s31 = ssub.s32 %s26, 1
      %s32 = ssub.s32 %s26, 2
      %s33 = sadd.s32 %s26, 1
      %s34 = ssub.s32 %s26, %s33
      %p35 = scmp.eq.s32.totalorder %s34, 0
      %s37 = sadd.s32 %s36, 1
      %s38 = scalar_select %p35, %s36, %s37
      %p41 = pneg %p35
      %p42 = scmp.eq.s32.totalorder %s26, 1
      %p43 = por %p41, %p42
      %p44 = scmp.ne.s32.totalorder %s36, %s39
      %p45 = scmp.eq.s32.totalorder %s26, 0
      %p46 = por %p44, %p45
      %p47 = scmp.ne.s32.totalorder %s36, %s39
      %p48 = scmp.eq.s32.totalorder %s31, 1
      %p49 = por %p47, %p48
      %p50 = scmp.ne.s32.totalorder %s39, %s40
      %p51 = scmp.eq.s32.totalorder %s31, 0
      %p52 = por %p50, %p51
      %p53 = scmp.ne.s32.totalorder %s39, %s40
      %p54 = scmp.eq.s32.totalorder %s32, 1
      %p55 = por %p53, %p54
      %p57 = scmp.ne.s32.totalorder %s40, %s56
      %p58 = scmp.eq.s32.totalorder %s32, 0
      %p59 = por %p57, %p58
      %s61 = sadd.s32 %s60, 1
      %p64 = scmp.eq.s32.totalorder %s26, 1
      %p65 = scmp.ne.s32.totalorder %s60, %s62
      %p66 = scmp.eq.s32.totalorder %s26, 0
      %p67 = por %p65, %p66
      %p68 = scmp.ne.s32.totalorder %s60, %s62
      %p69 = scmp.eq.s32.totalorder %s31, 1
      %p70 = por %p68, %p69
      %p71 = scmp.ne.s32.totalorder %s62, %s63
      %p72 = scmp.eq.s32.totalorder %s31, 0
      %p73 = por %p71, %p72
      %p74 = scmp.ne.s32.totalorder %s62, %s63
      %p75 = scmp.eq.s32.totalorder %s32, 1
      %p76 = por %p74, %p75
      %p78 = scmp.ne.s32.totalorder %s63, %s77
      %p79 = scmp.eq.s32.totalorder %s32, 0
      %p80 = por %p78, %p79
      %s82 = sadd.s32 %s81, 1
      %p85 = scmp.eq.s32.totalorder %s26, 1
      %p86 = scmp.ne.s32.totalorder %s81, %s83
      %p87 = scmp.eq.s32.totalorder %s26, 0
      %p88 = por %p86, %p87
      %p89 = scmp.ne.s32.totalorder %s81, %s83
      %p90 = scmp.eq.s32.totalorder %s31, 1
      %p91 = por %p89, %p90
      %p92 = scmp.ne.s32.totalorder %s83, %s84
      %p93 = scmp.eq.s32.totalorder %s31, 0
      %p94 = por %p92, %p93
      %p95 = scmp.ne.s32.totalorder %s83, %s84
      %p96 = scmp.eq.s32.totalorder %s32, 1
      %p97 = por %p95, %p96
      %p99 = scmp.ne.s32.totalorder %s84, %s98
      %p100 = scmp.eq.s32.totalorder %s32, 0
      %p101 = por %p99, %p100
      %s103 = sadd.s32 %s102, 1
      %p106 = scmp.eq.s32.totalorder %s26, 1
      %p107 = scmp.ne.s32.totalorder %s102, %s104
      %p108 = scmp.eq.s32.totalorder %s26, 0
      %p109 = por %p107, %p108
      %p110 = scmp.ne.s32.totalorder %s102, %s104
      %p111 = scmp.eq.s32.totalorder %s31, 1
      %p112 = por %p110, %p111
      %p113 = scmp.ne.s32.totalorder %s104, %s105
      %p114 = scmp.eq.s32.totalorder %s31, 0
      %p115 = por %p113, %p114
      %p116 = scmp.ne.s32.totalorder %s104, %s105
      %p117 = scmp.eq.s32.totalorder %s32, 1
      %p118 = por %p116, %p117
      %p120 = scmp.ne.s32.totalorder %s105, %s119
      %p121 = scmp.eq.s32.totalorder %s32, 0
      %p122 = por %p120, %p121
      %s124 = sadd.s32 %s123, 1
      %p127 = scmp.eq.s32.totalorder %s26, 1
      %p128 = scmp.ne.s32.totalorder %s123, %s125
      %p129 = scmp.eq.s32.totalorder %s26, 0
      %p130 = por %p128, %p129
      %p131 = scmp.ne.s32.totalorder %s123, %s125
      %p132 = scmp.eq.s32.totalorder %s31, 1
      %p133 = por %p131, %p132
      %p134 = scmp.ne.s32.totalorder %s125, %s126
      %p135 = scmp.eq.s32.totalorder %s31, 0
      %p136 = por %p134, %p135
      %p137 = scmp.ne.s32.totalorder %s125, %s126
      %p138 = scmp.eq.s32.totalorder %s32, 1
      %p139 = por %p137, %p138
      %p141 = scmp.ne.s32.totalorder %s126, %s140
      %p142 = scmp.eq.s32.totalorder %s32, 0
      %p143 = por %p141, %p142
      %s145 = sadd.s32 %s144, 1
      %p148 = scmp.eq.s32.totalorder %s26, 1
      %p149 = scmp.ne.s32.totalorder %s144, %s146
      %p150 = scmp.eq.s32.totalorder %s26, 0
      %p151 = por %p149, %p150
      %p152 = scmp.ne.s32.totalorder %s144, %s146
      %p153 = scmp.eq.s32.totalorder %s31, 1
      %p154 = por %p152, %p153
      %p155 = scmp.ne.s32.totalorder %s146, %s147
      %p156 = scmp.eq.s32.totalorder %s31, 0
      %p157 = por %p155, %p156
      %p158 = scmp.ne.s32.totalorder %s146, %s147
      %p159 = scmp.eq.s32.totalorder %s32, 1
      %p160 = por %p158, %p159
      %p162 = scmp.ne.s32.totalorder %s147, %s161
      %p163 = scmp.eq.s32.totalorder %s32, 0
      %p164 = por %p162, %p163
      %s166 = sadd.s32 %s165, 1
      %p169 = scmp.eq.s32.totalorder %s26, 1
      %p170 = scmp.ne.s32.totalorder %s165, %s167
      %p171 = scmp.eq.s32.totalorder %s26, 0
      %p172 = por %p170, %p171
      %p173 = scmp.ne.s32.totalorder %s165, %s167
      %p174 = scmp.eq.s32.totalorder %s31, 1
      %p175 = por %p173, %p174
      %p176 = scmp.ne.s32.totalorder %s167, %s168
      %p177 = scmp.eq.s32.totalorder %s31, 0
      %p178 = por %p176, %p177
      %p179 = scmp.ne.s32.totalorder %s167, %s168
      %p180 = scmp.eq.s32.totalorder %s32, 1
      %p181 = por %p179, %p180
      %p183 = scmp.ne.s32.totalorder %s168, %s182
      %p184 = scmp.eq.s32.totalorder %s32, 0
      %p185 = por %p183, %p184
      %s187 = sadd.s32 %s186, 1
      %p190 = scmp.eq.s32.totalorder %s26, 1
      %p191 = scmp.ne.s32.totalorder %s186, %s188
      %p192 = scmp.eq.s32.totalorder %s26, 0
      %p193 = por %p191, %p192
      %p194 = scmp.ne.s32.totalorder %s186, %s188
      %p195 = scmp.eq.s32.totalorder %s31, 1
      %p196 = por %p194, %p195
      %p197 = scmp.ne.s32.totalorder %s188, %s189
      %p198 = scmp.eq.s32.totalorder %s31, 0
      %p199 = por %p197, %p198
      %p200 = scmp.ne.s32.totalorder %s188, %s189
      %p201 = scmp.eq.s32.totalorder %s32, 1
      %p202 = por %p200, %p201
      %p204 = scmp.ne.s32.totalorder %s189, %s203
      %p205 = scmp.eq.s32.totalorder %s32, 0
      %p206 = por %p204, %p205
      %s208 = sadd.s32 %s207, 1
      %p211 = scmp.eq.s32.totalorder %s26, 1
      %p212 = scmp.ne.s32.totalorder %s207, %s209
      %p213 = scmp.eq.s32.totalorder %s26, 0
      %p214 = por %p212, %p213
      %p215 = scmp.ne.s32.totalorder %s207, %s209
      %p216 = scmp.eq.s32.totalorder %s31, 1
      %p217 = por %p215, %p216
      %p218 = scmp.ne.s32.totalorder %s209, %s210
      %p219 = scmp.eq.s32.totalorder %s31, 0
      %p220 = por %p218, %p219
      %p221 = scmp.ne.s32.totalorder %s209, %s210
      %p222 = scmp.eq.s32.totalorder %s32, 1
      %p223 = por %p221, %p222
      %p225 = scmp.ne.s32.totalorder %s210, %s224
      %p226 = scmp.eq.s32.totalorder %s32, 0
      %p227 = por %p225, %p226
      %s229 = sadd.s32 %s228, 1
      %p232 = scmp.eq.s32.totalorder %s26, 1
      %p233 = scmp.ne.s32.totalorder %s228, %s230
      %p234 = scmp.eq.s32.totalorder %s26, 0
      %p235 = por %p233, %p234
      %p236 = scmp.ne.s32.totalorder %s228, %s230
      %p237 = scmp.eq.s32.totalorder %s31, 1
      %p238 = por %p236, %p237
      %p239 = scmp.ne.s32.totalorder %s230, %s231
      %p240 = scmp.eq.s32.totalorder %s31, 0
      %p241 = por %p239, %p240
      %p242 = scmp.ne.s32.totalorder %s230, %s231
      %p243 = scmp.eq.s32.totalorder %s32, 1
      %p244 = por %p242, %p243
      %p246 = scmp.ne.s32.totalorder %s231, %s245
      %p247 = scmp.eq.s32.totalorder %s32, 0
      %p248 = por %p246, %p247
      %s250 = sadd.s32 %s249, 1
      %p253 = scmp.eq.s32.totalorder %s26, 1
      %p254 = scmp.ne.s32.totalorder %s249, %s251
      %p255 = scmp.eq.s32.totalorder %s26, 0
      %p256 = por %p254, %p255
      %p257 = scmp.ne.s32.totalorder %s249, %s251
      %p258 = scmp.eq.s32.totalorder %s31, 1
      %p259 = por %p257, %p258
      %p260 = scmp.ne.s32.totalorder %s251, %s252
      %p261 = scmp.eq.s32.totalorder %s31, 0
      %p262 = por %p260, %p261
      %p263 = scmp.ne.s32.totalorder %s251, %s252
      %p264 = scmp.eq.s32.totalorder %s32, 1
      %p265 = por %p263, %p264
      %p267 = scmp.ne.s32.totalorder %s252, %s266
      %p268 = scmp.eq.s32.totalorder %s32, 0
      %p269 = por %p267, %p268
      %s271 = sadd.s32 %s270, 1
      %p274 = scmp.eq.s32.totalorder %s26, 1
      %p275 = scmp.ne.s32.totalorder %s270, %s272
      %p276 = scmp.eq.s32.totalorder %s26, 0
      %p277 = por %p275, %p276
      %p278 = scmp.ne.s32.totalorder %s270, %s272
      %p279 = scmp.eq.s32.totalorder %s31, 1
      %p280 = por %p278, %p279
      %p281 = scmp.ne.s32.totalorder %s272, %s273
      %p282 = scmp.eq.s32.totalorder %s31, 0
      %p283 = por %p281, %p282
      %p284 = scmp.ne.s32.totalorder %s272, %s273
      %p285 = scmp.eq.s32.totalorder %s32, 1
      %p286 = por %p284, %p285
      %p288 = scmp.ne.s32.totalorder %s273, %s287
      %p289 = scmp.eq.s32.totalorder %s32, 0
      %p290 = por %p288, %p289
      %s292 = sadd.s32 %s291, 1
      %p295 = scmp.eq.s32.totalorder %s26, 1
      %p296 = scmp.ne.s32.totalorder %s291, %s293
      %p297 = scmp.eq.s32.totalorder %s26, 0
      %p298 = por %p296, %p297
      %p299 = scmp.ne.s32.totalorder %s291, %s293
      %p300 = scmp.eq.s32.totalorder %s31, 1
      %p301 = por %p299, %p300
      %p302 = scmp.ne.s32.totalorder %s293, %s294
      %p303 = scmp.eq.s32.totalorder %s31, 0
      %p304 = por %p302, %p303
      %p305 = scmp.ne.s32.totalorder %s293, %s294
      %p306 = scmp.eq.s32.totalorder %s32, 1
      %p307 = por %p305, %p306
      %p309 = scmp.ne.s32.totalorder %s294, %s308
      %p310 = scmp.eq.s32.totalorder %s32, 0
      %p311 = por %p309, %p310
      %s313 = sadd.s32 %s312, 1
      %p316 = scmp.eq.s32.totalorder %s26, 1
      %p317 = scmp.ne.s32.totalorder %s312, %s314
      %p318 = scmp.eq.s32.totalorder %s26, 0
      %p319 = por %p317, %p318
      %p320 = scmp.ne.s32.totalorder %s312, %s314
      %p321 = scmp.eq.s32.totalorder %s31, 1
      %p322 = por %p320, %p321
      %p323 = scmp.ne.s32.totalorder %s314, %s315
      %p324 = scmp.eq.s32.totalorder %s31, 0
      %p325 = por %p323, %p324
      %p326 = scmp.ne.s32.totalorder %s314, %s315
      %p327 = scmp.eq.s32.totalorder %s32, 1
      %p328 = por %p326, %p327
      %p330 = scmp.ne.s32.totalorder %s315, %s329
      %p331 = scmp.eq.s32.totalorder %s32, 0
      %p332 = por %p330, %p331
      %s334 = sadd.s32 %s333, 1
      %p337 = scmp.eq.s32.totalorder %s26, 1
      %p338 = scmp.ne.s32.totalorder %s333, %s335
      %p339 = scmp.eq.s32.totalorder %s26, 0
      %p340 = por %p338, %p339
      %p341 = scmp.ne.s32.totalorder %s333, %s335
      %p342 = scmp.eq.s32.totalorder %s31, 1
      %p343 = por %p341, %p342
      %p344 = scmp.ne.s32.totalorder %s335, %s336
      %p345 = scmp.eq.s32.totalorder %s31, 0
      %p346 = por %p344, %p345
      %p347 = scmp.ne.s32.totalorder %s335, %s336
      %p348 = scmp.eq.s32.totalorder %s32, 1
      %p349 = por %p347, %p348
      %p351 = scmp.ne.s32.totalorder %s336, %s350
      %p352 = scmp.eq.s32.totalorder %s32, 0
      %p353 = por %p351, %p352
      %s355 = sadd.s32 %s354, 1
      %p358 = scmp.eq.s32.totalorder %s26, 1
      %p359 = scmp.ne.s32.totalorder %s354, %s356
      %p360 = scmp.eq.s32.totalorder %s26, 0
      %p361 = por %p359, %p360
      %p362 = scmp.ne.s32.totalorder %s354, %s356
      %p363 = scmp.eq.s32.totalorder %s31, 1
      %p364 = por %p362, %p363
      %p365 = scmp.ne.s32.totalorder %s356, %s357
      %p366 = scmp.eq.s32.totalorder %s31, 0
      %p367 = por %p365, %p366
      %p368 = scmp.ne.s32.totalorder %s356, %s357
      %p369 = scmp.eq.s32.totalorder %s32, 1
      %p370 = por %p368, %p369
      %p372 = scmp.ne.s32.totalorder %s357, %s371
      %p373 = scmp.eq.s32.totalorder %s32, 0
      %p374 = por %p372, %p373
      %s376 = sadd.s32 %s375, 1
      %p379 = scmp.eq.s32.totalorder %s26, 1
      %p380 = scmp.ne.s32.totalorder %s375, %s377
      %p381 = scmp.eq.s32.totalorder %s26, 0
      %p382 = por %p380, %p381
      %p383 = scmp.ne.s32.totalorder %s375, %s377
      %p384 = scmp.eq.s32.totalorder %s31, 1
      %p385 = por %p383, %p384
      %p386 = scmp.ne.s32.totalorder %s377, %s378
      %p387 = scmp.eq.s32.totalorder %s31, 0
      %p388 = por %p386, %p387
      %p389 = scmp.ne.s32.totalorder %s377, %s378
      %p390 = scmp.eq.s32.totalorder %s32, 1
      %p391 = por %p389, %p390
      %p393 = scmp.ne.s32.totalorder %s378, %s392
      %p394 = scmp.eq.s32.totalorder %s32, 0
      %p395 = por %p393, %p394
      %s396 = ssub.s32 %s26, %s33
      %p397 = scmp.eq.s32.totalorder %s396, 0
      %s399 = sadd.s32 %s398, 1
      %s400 = scalar_select %p397, %s398, %s399
      %p403 = pneg %p397
      %p404 = scmp.eq.s32.totalorder %s26, 1
      %p405 = por %p403, %p404
      %p406 = scmp.ne.s32.totalorder %s398, %s401
      %p407 = scmp.eq.s32.totalorder %s26, 0
      %p408 = por %p406, %p407
      %p409 = scmp.ne.s32.totalorder %s398, %s401
      %p410 = scmp.eq.s32.totalorder %s31, 1
      %p411 = por %p409, %p410
      %p412 = scmp.ne.s32.totalorder %s401, %s402
      %p413 = scmp.eq.s32.totalorder %s31, 0
      %p414 = por %p412, %p413
      %p415 = scmp.ne.s32.totalorder %s401, %s402
      %p416 = scmp.eq.s32.totalorder %s32, 1
      %p417 = por %p415, %p416
      %p419 = scmp.ne.s32.totalorder %s402, %s418
      %p420 = scmp.eq.s32.totalorder %s32, 0
      %p421 = por %p419, %p420
      %p422 = scmp.le.s32.totalorder 1, %s26
      %p423 = scmp.lt.s32.totalorder %s26, 3
      %p424 = pnand %p422, %p423
      %p425 = pneg %p424
      // Predicated region
      $region9: #{tpu_custom_call.1} parent=5 // pred_check
        _
      $region10: #{tpu_custom_call.1} parent=5 // pred_check_branch
        %427 = sbr.rel (%p424) target = $region12
      $region11: #{tpu_custom_call.1} parent=5 // pred_region
        %s428 = ssub.s32 %s26, 1
        // Predicated region
        $region13: #{tpu_custom_call.1} parent=11 // pred_check
          %p429 = pneg %p73
        $region14: #{tpu_custom_call.1} parent=11 // pred_check_branch
          %431 = sbr.rel (%p429) target = $region16
        $region15: #{tpu_custom_call.1} parent=11 // pred_region
          _
        $region16: #{tpu_custom_call.1} parent=11 // pred_fallthru
          _
        // Predicated region
        $region17: #{tpu_custom_call.1} parent=11 // pred_check
          %p432 = pneg %p94
        $region18: #{tpu_custom_call.1} parent=11 // pred_check_branch
          %434 = sbr.rel (%p432) target = $region20
        $region19: #{tpu_custom_call.1} parent=11 // pred_region
          _
        $region20: #{tpu_custom_call.1} parent=11 // pred_fallthru
          _
        // Predicated region
        $region21: #{tpu_custom_call.1} parent=11 // pred_check
          %p435 = pneg %p115
        $region22: #{tpu_custom_call.1} parent=11 // pred_check_branch
          %437 = sbr.rel (%p435) target = $region24
        $region23: #{tpu_custom_call.1} parent=11 // pred_region
          _
        $region24: #{tpu_custom_call.1} parent=11 // pred_fallthru
          _
        // Predicated region
        $region25: #{tpu_custom_call.1} parent=11 // pred_check
          %p438 = pneg %p136
        $region26: #{tpu_custom_call.1} parent=11 // pred_check_branch
          %440 = sbr.rel (%p438) target = $region28
        $region27: #{tpu_custom_call.1} parent=11 // pred_region
          _
        $region28: #{tpu_custom_call.1} parent=11 // pred_fallthru
          _
        // Predicated region
        $region29: #{tpu_custom_call.1} parent=11 // pred_check
          %p441 = pneg %p157
        $region30: #{tpu_custom_call.1} parent=11 // pred_check_branch
          %443 = sbr.rel (%p441) target = $region32
        $region31: #{tpu_custom_call.1} parent=11 // pred_region
          _
        $region32: #{tpu_custom_call.1} parent=11 // pred_fallthru
          _
        // Predicated region
        $region33: #{tpu_custom_call.1} parent=11 // pred_check
          %p444 = pneg %p178
        $region34: #{tpu_custom_call.1} parent=11 // pred_check_branch
          %446 = sbr.rel (%p444) target = $region36
        $region35: #{tpu_custom_call.1} parent=11 // pred_region
          _
        $region36: #{tpu_custom_call.1} parent=11 // pred_fallthru
          _
        // Predicated region
        $region37: #{tpu_custom_call.1} parent=11 // pred_check
          %p447 = pneg %p199
        $region38: #{tpu_custom_call.1} parent=11 // pred_check_branch
          %449 = sbr.rel (%p447) target = $region40
        $region39: #{tpu_custom_call.1} parent=11 // pred_region
          _
        $region40: #{tpu_custom_call.1} parent=11 // pred_fallthru
          _
        // Predicated region
        $region41: #{tpu_custom_call.1} parent=11 // pred_check
          %p450 = pneg %p220
        $region42: #{tpu_custom_call.1} parent=11 // pred_check_branch
          %452 = sbr.rel (%p450) target = $region44
        $region43: #{tpu_custom_call.1} parent=11 // pred_region
          _
        $region44: #{tpu_custom_call.1} parent=11 // pred_fallthru
          _
        // Predicated region
        $region45: #{tpu_custom_call.1} parent=11 // pred_check
          %p453 = pneg %p241
        $region46: #{tpu_custom_call.1} parent=11 // pred_check_branch
          %455 = sbr.rel (%p453) target = $region48
        $region47: #{tpu_custom_call.1} parent=11 // pred_region
          _
        $region48: #{tpu_custom_call.1} parent=11 // pred_fallthru
          _
        // Predicated region
        $region49: #{tpu_custom_call.1} parent=11 // pred_check
          %p456 = pneg %p262
        $region50: #{tpu_custom_call.1} parent=11 // pred_check_branch
          %458 = sbr.rel (%p456) target = $region52
        $region51: #{tpu_custom_call.1} parent=11 // pred_region
          _
        $region52: #{tpu_custom_call.1} parent=11 // pred_fallthru
          _
        // Predicated region
        $region53: #{tpu_custom_call.1} parent=11 // pred_check
          %p459 = pneg %p283
        $region54: #{tpu_custom_call.1} parent=11 // pred_check_branch
          %461 = sbr.rel (%p459) target = $region56
        $region55: #{tpu_custom_call.1} parent=11 // pred_region
          _
        $region56: #{tpu_custom_call.1} parent=11 // pred_fallthru
          _
        // Predicated region
        $region57: #{tpu_custom_call.1} parent=11 // pred_check
          %p462 = pneg %p304
        $region58: #{tpu_custom_call.1} parent=11 // pred_check_branch
          %464 = sbr.rel (%p462) target = $region60
        $region59: #{tpu_custom_call.1} parent=11 // pred_region
          _
        $region60: #{tpu_custom_call.1} parent=11 // pred_fallthru
          _
        // Predicated region
        $region61: #{tpu_custom_call.1} parent=11 // pred_check
          %p465 = pneg %p325
        $region62: #{tpu_custom_call.1} parent=11 // pred_check_branch
          %467 = sbr.rel (%p465) target = $region64
        $region63: #{tpu_custom_call.1} parent=11 // pred_region
          _
        $region64: #{tpu_custom_call.1} parent=11 // pred_fallthru
          _
        // Predicated region
        $region65: #{tpu_custom_call.1} parent=11 // pred_check
          %p468 = pneg %p346
        $region66: #{tpu_custom_call.1} parent=11 // pred_check_branch
          %470 = sbr.rel (%p468) target = $region68
        $region67: #{tpu_custom_call.1} parent=11 // pred_region
          _
        $region68: #{tpu_custom_call.1} parent=11 // pred_fallthru
          _
        // Predicated region
        $region69: #{tpu_custom_call.1} parent=11 // pred_check
          %p471 = pneg %p367
        $region70: #{tpu_custom_call.1} parent=11 // pred_check_branch
          %473 = sbr.rel (%p471) target = $region72
        $region71: #{tpu_custom_call.1} parent=11 // pred_region
          _
        $region72: #{tpu_custom_call.1} parent=11 // pred_fallthru
          _
        // Predicated region
        $region73: #{tpu_custom_call.1} parent=11 // pred_check
          %p474 = pneg %p388
        $region74: #{tpu_custom_call.1} parent=11 // pred_check_branch
          %476 = sbr.rel (%p474) target = $region76
        $region75: #{tpu_custom_call.1} parent=11 // pred_region
          _
        $region76: #{tpu_custom_call.1} parent=11 // pred_fallthru
          _
      $region12: #{tpu_custom_call.1} parent=5 // pred_fallthru
        _
      %p477 = scmp.lt.s32.totalorder %s26, 2
      // Predicated region
      $region77: #{tpu_custom_call.1} parent=5 // pred_check
        %p478 = pneg %p477
      $region78: #{tpu_custom_call.1} parent=5 // pred_check_branch
        %480 = sbr.rel (%p478) target = $region80
      $region79: #{tpu_custom_call.1} parent=5 // pred_region
        // Predicated region
        $region81: #{tpu_custom_call.1} parent=79 // pred_check
          %p481 = pneg %p46
        $region82: #{tpu_custom_call.1} parent=79 // pred_check_branch
          %483 = sbr.rel (%p481) target = $region84
        $region83: #{tpu_custom_call.1} parent=79 // pred_region
          %s484 = smul.u32 20, %s26
          %p485 = scmp.lt.s32.totalorder %s484, 39
          %s486 = scalar_select %p485, %s484, 39
          %s487 = smul.addr %s486, 4
          %s488 = scalar_lea.vmem %s0, %s487
          %s489 = smul.u32 20, %s26
        $region84: #{tpu_custom_call.1} parent=79 // pred_fallthru
          _
      $region80: #{tpu_custom_call.1} parent=5 // pred_fallthru
        _
      %p490 = scmp.le.s32.totalorder 1, %s26
      %p491 = scmp.lt.s32.totalorder %s26, 3
      %p492 = pnand %p490, %p491
      %p493 = pneg %p492
      // Predicated region
      $region85: #{tpu_custom_call.1} parent=5 // pred_check
        _
      $region86: #{tpu_custom_call.1} parent=5 // pred_check_branch
        %495 = sbr.rel (%p492) target = $region88
      $region87: #{tpu_custom_call.1} parent=5 // pred_region
        %s496 = ssub.s32 %s26, 1
        %s497 = smul.u32 20, %s31
        %p498 = scmp.lt.s32.totalorder %s497, 39
        %s499 = scalar_select %p498, %s497, 39
        %s500 = smul.addr %s499, 4
        %s501 = scalar_lea.vmem %s0, %s500
        %p502 = pneg %p52
        %p503 = pneg %p49
        %p504 = pneg %p73
        %p505 = pneg %p70
        %p506 = pneg %p94
        %p507 = pneg %p91
        %p508 = pneg %p115
        %p509 = pneg %p112
        %p510 = pneg %p136
        %p511 = pneg %p133
        %p512 = pneg %p157
        %p513 = pneg %p154
        %p514 = pneg %p178
        %p515 = pneg %p175
        %p516 = pneg %p199
        %p517 = pneg %p196
        %p518 = pneg %p220
        %p519 = pneg %p217
        %p520 = pneg %p241
        %p521 = pneg %p238
        %p522 = pneg %p262
        %p523 = pneg %p259
        %p524 = pneg %p283
        %p525 = pneg %p280
        %p526 = pneg %p304
        %p527 = pneg %p301
        %p528 = pneg %p325
        %p529 = pneg %p322
        %p530 = pneg %p346
        %p531 = pneg %p343
        %p532 = pneg %p367
        %p533 = pneg %p364
        %p534 = pneg %p388
        %p535 = pneg %p385
        %p536 = pneg %p414
        %p537 = pneg %p411
        %s538 = sand.u32 %s401, 1
        %s539 = scalar_lea.sflag [#allocation3], %s538
        %s540 = sand.u32 %s401, 1
        %s541 = smul.addr %s540, 160
        %s542 = scalar_lea.vmem [#allocation2], %s541
        %s543 = smul.u32 20, %s31
        %p544 = scmp.lt.s32.totalorder %s543, 39
        %s545 = scalar_select %p544, %s543, 39
        %s546 = smul.addr %s545, 4
        %s547 = scalar_lea.vmem %s0, %s546
        %s548 = smul.u32 20, %s31
        %s549 = smul.u32 20, %s31
        %v551 = vld [vmem:[%s547] sm:$0xf]
        %v552 = vld [vmem:[%s547 + $0x4] sm:$0xf]
        %v553 = vld [vmem:[%s547 + $0x8] sm:$0xf]
        %v554 = vld [vmem:[%s547 + $0xc] sm:$0xf]
        %v555 = vld [vmem:[%s547 + $0x10] sm:$0xf]
        %v556 = vld [vmem:[%s547 + $0x14] sm:$0xf]
        %v557 = vld [vmem:[%s547 + $0x18] sm:$0xf]
        %v558 = vld [vmem:[%s547 + $0x1c] sm:$0xf]
        %v559 = vld [vmem:[%s547 + $0x20] sm:$0xf]
        %v560 = vld [vmem:[%s547 + $0x24] sm:$0xf]
        %v561 = vld [vmem:[%s547 + $0x28] sm:$0xf]
        %v562 = vld [vmem:[%s547 + $0x2c] sm:$0xf]
        %v563 = vld [vmem:[%s547 + $0x30] sm:$0xf]
        %v564 = vld [vmem:[%s547 + $0x34] sm:$0xf]
        %v565 = vld [vmem:[%s547 + $0x38] sm:$0xf]
        %v566 = vld [vmem:[%s547 + $0x3c] sm:$0xf]
        %v567 = vld [vmem:[%s547 + $0x40] sm:$0xf]
        %v568 = vld [vmem:[%s547 + $0x44] sm:$0xf]
        %v569 = vld [vmem:[%s547 + $0x48] sm:$0xf]
        %v570 = vld [vmem:[%s547 + $0x4c] sm:$0xf]
        %v571 = vld [vmem:[%s1] sm:$0xf]
        %v572 = vld [vmem:[%s1 + $0x4] sm:$0xf]
        %v573 = vld [vmem:[%s1 + $0x8] sm:$0xf]
        %v574 = vld [vmem:[%s1 + $0xc] sm:$0xf]
        %v575 = vld [vmem:[%s2] sm:$0x1]
        %v577 = vlaneseq
        %v578 = vshrl.u32 %v577, 7
        %v579 = vsub.s32 0, %v578
        %v580 = vrot.slane %v575, %v579
        %v602 = vunpack.c.l.b16 %v551
        %v603 = vunpack.c.l.b16 %v552
        %v604 = vunpack.c.l.b16 %v553
        %v605 = vunpack.c.l.b16 %v554
        %v606 = vunpack.c.l.b16 %v555
        %v607 = vunpack.c.l.b16 %v556
        %v608 = vunpack.c.l.b16 %v557
        %v609 = vunpack.c.l.b16 %v558
        %v610 = vunpack.c.l.b16 %v559
        %v611 = vunpack.c.l.b16 %v560
        %v612 = vunpack.c.l.b16 %v561
        %v613 = vunpack.c.l.b16 %v562
        %v614 = vunpack.c.l.b16 %v563
        %v615 = vunpack.c.l.b16 %v564
        %v616 = vunpack.c.l.b16 %v565
        %v617 = vunpack.c.l.b16 %v566
        %v618 = vunpack.c.l.b16 %v567
        %v619 = vunpack.c.l.b16 %v568
        %v620 = vunpack.c.l.b16 %v569
        %v621 = vunpack.c.l.b16 %v570
        %v622 = vpack.c.b16 %v603, %v602
        %v623 = vpack.c.b16 %v605, %v604
        %v624 = vpack.c.b16 %v607, %v606
        %v625 = vpack.c.b16 %v609, %v608
        %v626 = vpack.c.b16 %v611, %v610
        %v627 = vpack.c.b16 %v613, %v612
        %v628 = vpack.c.b16 %v615, %v614
        %v629 = vpack.c.b16 %v617, %v616
        %v630 = vpack.c.b16 %v619, %v618
        %v631 = vpack.c.b16 %v621, %v620
        %v636 = vunpack.c.l.b16 %v571
        %v637 = vunpack.c.l.b16 %v572
        %v638 = vunpack.c.l.b16 %v573
        %v639 = vunpack.c.l.b16 %v574
        %v640 = vpack.c.b16 %v637, %v636
        %v641 = vpack.c.b16 %v639, %v638
        %vm644 = vcmask 261120
        %v646 = vsel %vm644, %v622, 0
        %v649 = vsel %vm644, %v623, 0
        %v652 = vsel %vm644, %v624, 0
        %v655 = vsel %vm644, %v625, 0
        %v658 = vsel %vm644, %v626, 0
        %v661 = vsel %vm644, %v627, 0
        %v664 = vsel %vm644, %v628, 0
        %v667 = vsel %vm644, %v629, 0
        %v670 = vsel %vm644, %v630, 0
        %v673 = vsel %vm644, %v631, 0
        %675 = vmatprep.subr.bf16.mxu0 0
        %676 = vmatpush1.bf16.msra.mxu0 %v640
        %677 = vmatprep.subr.bf16.mxu0 0
        %678 = vmatpush1.bf16.msra.mxu0 %v641
        %679 = vmatprep.subr.bf16.mxu0 0
        %680 = vmatpush1.bf16.msra.mxu0 0
        %681 = vmatprep.subr.bf16.mxu0 0
        %682 = vmatpush1.bf16.msra.mxu0 0
        %683 = vmatprep.subr.bf16.mxu0 0
        %684 = vmatpush1.bf16.msra.mxu0 0
        %685 = vmatprep.subr.bf16.mxu0 0
        %686 = vmatpush1.bf16.msra.mxu0 0
        %687 = vmatprep.subr.bf16.mxu0 0
        %688 = vmatpush1.bf16.msra.mxu0 0
        %689 = vmatprep.subr.bf16.mxu0 0
        %690 = vmatpush1.bf16.msra.mxu0 0
        %691 = vmatprep.subr.bf16.mxu0 0
        %692 = vmatpush1.bf16.msra.mxu0 0
        %693 = vmatprep.subr.bf16.mxu0 0
        %694 = vmatpush1.bf16.msra.mxu0 0
        %695 = vmatprep.subr.bf16.mxu0 0
        %696 = vmatpush1.bf16.msra.mxu0 0
        %697 = vmatprep.subr.bf16.mxu0 0
        %698 = vmatpush1.bf16.msra.mxu0 0
        %699 = vmatprep.subr.bf16.mxu0 0
        %700 = vmatpush1.bf16.msra.mxu0 0
        %701 = vmatprep.subr.bf16.mxu0 0
        %702 = vmatpush1.bf16.msra.mxu0 0
        %703 = vmatprep.subr.bf16.mxu0 0
        %704 = vmatpush1.bf16.msra.mxu0 0
        %705 = vmatprep.subr.bf16.mxu0 0
        %706 = vmatpush1.bf16.msra.mxu0 0
        %707 = vmatprep.mubr.bf16.mxu0 0
        %708 = vmatmul.mubr.bf16.gmra.mrb[0].mxu0 %v646
        %v709 = vpop.f32.mrb[0].mxu0
        %v710 = vadd.f32 %v580, %v709
        %v711 = vpop.f32.mrb[0].mxu0
        %v712 = vpop.f32.mrb[0].mxu0
        %v713 = vadd.f32 %v580, %v712
        %v714 = vpop.f32.mrb[0].mxu0
        %715 = vmatprep.mubr.bf16.mxu0 0
        %716 = vmatmul.mubr.bf16.gmra.mrb[0].mxu0 %v649
        %v717 = vpop.f32.mrb[0].mxu0
        %v718 = vadd.f32 %v580, %v717
        %v719 = vpop.f32.mrb[0].mxu0
        %v720 = vpop.f32.mrb[0].mxu0
        %v721 = vadd.f32 %v580, %v720
        %v722 = vpop.f32.mrb[0].mxu0
        %723 = vmatprep.mubr.bf16.mxu0 0
        %724 = vmatmul.mubr.bf16.gmra.mrb[0].mxu0 %v652
        %v725 = vpop.f32.mrb[0].mxu0
        %v726 = vadd.f32 %v580, %v725
        %v727 = vpop.f32.mrb[0].mxu0
        %v728 = vpop.f32.mrb[0].mxu0
        %v729 = vadd.f32 %v580, %v728
        %v730 = vpop.f32.mrb[0].mxu0
        %731 = vmatprep.mubr.bf16.mxu0 0
        %732 = vmatmul.mubr.bf16.gmra.mrb[0].mxu0 %v655
        %v733 = vpop.f32.mrb[0].mxu0
        %v734 = vadd.f32 %v580, %v733
        %v735 = vpop.f32.mrb[0].mxu0
        %v736 = vpop.f32.mrb[0].mxu0
        %v737 = vadd.f32 %v580, %v736
        %v738 = vpop.f32.mrb[0].mxu0
        %739 = vmatprep.mubr.bf16.mxu0 0
        %740 = vmatmul.mubr.bf16.gmra.mrb[0].mxu0 %v658
        %v741 = vpop.f32.mrb[0].mxu0
        %v742 = vadd.f32 %v580, %v741
        %v743 = vpop.f32.mrb[0].mxu0
        %v744 = vpop.f32.mrb[0].mxu0
        %v745 = vadd.f32 %v580, %v744
        %v746 = vpop.f32.mrb[0].mxu0
        %747 = vmatprep.mubr.bf16.mxu0 0
        %748 = vmatmul.mubr.bf16.gmra.mrb[0].mxu0 %v661
        %v749 = vpop.f32.mrb[0].mxu0
        %v750 = vadd.f32 %v580, %v749
        %v751 = vpop.f32.mrb[0].mxu0
        %v752 = vpop.f32.mrb[0].mxu0
        %v753 = vadd.f32 %v580, %v752
        %v754 = vpop.f32.mrb[0].mxu0
        %755 = vmatprep.mubr.bf16.mxu0 0
        %756 = vmatmul.mubr.bf16.gmra.mrb[0].mxu0 %v664
        %v757 = vpop.f32.mrb[0].mxu0
        %v758 = vadd.f32 %v580, %v757
        %v759 = vpop.f32.mrb[0].mxu0
        %v760 = vpop.f32.mrb[0].mxu0
        %v761 = vadd.f32 %v580, %v760
        %v762 = vpop.f32.mrb[0].mxu0
        %763 = vmatprep.mubr.bf16.mxu0 0
        %764 = vmatmul.mubr.bf16.gmra.mrb[0].mxu0 %v667
        %v765 = vpop.f32.mrb[0].mxu0
        %v766 = vadd.f32 %v580, %v765
        %v767 = vpop.f32.mrb[0].mxu0
        %v768 = vpop.f32.mrb[0].mxu0
        %v769 = vadd.f32 %v580, %v768
        %v770 = vpop.f32.mrb[0].mxu0
        %771 = vmatprep.mubr.bf16.mxu0 0
        %772 = vmatmul.mubr.bf16.gmra.mrb[0].mxu0 %v670
        %v773 = vpop.f32.mrb[0].mxu0
        %v774 = vadd.f32 %v580, %v773
        %v775 = vpop.f32.mrb[0].mxu0
        %v776 = vpop.f32.mrb[0].mxu0
        %v777 = vadd.f32 %v580, %v776
        %v778 = vpop.f32.mrb[0].mxu0
        %779 = vmatprep.mubr.bf16.mxu0 0
        %780 = vmatmul.mubr.bf16.gmra.mrb[0].mxu0 %v673
        %v781 = vpop.f32.mrb[0].mxu0
        %v782 = vadd.f32 %v580, %v781
        %v783 = vpop.f32.mrb[0].mxu0
        %v784 = vpop.f32.mrb[0].mxu0
        %v785 = vadd.f32 %v580, %v784
        %v786 = vpop.f32.mrb[0].mxu0
        %787 = vdwg.mxu0
        %v788 = vmax.f32 %v710, 0.0
        %v789 = vmax.f32 %v713, 0.0
        %v790 = vmax.f32 %v718, 0.0
        %v791 = vmax.f32 %v721, 0.0
        %v792 = vmax.f32 %v726, 0.0
        %v793 = vmax.f32 %v729, 0.0
        %v794 = vmax.f32 %v734, 0.0
        %v795 = vmax.f32 %v737, 0.0
        %v796 = vmax.f32 %v742, 0.0
        %v797 = vmax.f32 %v745, 0.0
        %v798 = vmax.f32 %v750, 0.0
        %v799 = vmax.f32 %v753, 0.0
        %v800 = vmax.f32 %v758, 0.0
        %v801 = vmax.f32 %v761, 0.0
        %v802 = vmax.f32 %v766, 0.0
        %v803 = vmax.f32 %v769, 0.0
        %v804 = vmax.f32 %v774, 0.0
        %v805 = vmax.f32 %v777, 0.0
        %v806 = vmax.f32 %v782, 0.0
        %v807 = vmax.f32 %v785, 0.0
        %v808 = vpack.c.bf16 %v789, %v788
        %v809 = vpack.c.bf16 %v791, %v790
        %v810 = vpack.c.bf16 %v793, %v792
        %v811 = vpack.c.bf16 %v795, %v794
        %v812 = vpack.c.bf16 %v797, %v796
        %v813 = vpack.c.bf16 %v799, %v798
        %v814 = vpack.c.bf16 %v801, %v800
        %v815 = vpack.c.bf16 %v803, %v802
        %v816 = vpack.c.bf16 %v805, %v804
        %v817 = vpack.c.bf16 %v807, %v806
        %v818 = vld [vmem:[%s3] sm:$0xf]
        %v819 = vld [vmem:[%s3 + $0x4] sm:$0xf]
        %v820 = vld [vmem:[%s3 + $0x8] sm:$0xf]
        %v821 = vld [vmem:[%s3 + $0xc] sm:$0xf]
        %v822 = vld [vmem:[%s3 + $0x10] sm:$0xf]
        %v823 = vld [vmem:[%s3 + $0x14] sm:$0xf]
        %v824 = vld [vmem:[%s3 + $0x18] sm:$0xf]
        %v825 = vld [vmem:[%s3 + $0x1c] sm:$0xf]
        %v826 = vld [vmem:[%s3 + $0x20] sm:$0xf]
        %v827 = vld [vmem:[%s3 + $0x24] sm:$0xf]
        %v828 = vld [vmem:[%s3 + $0x28] sm:$0xf]
        %v829 = vld [vmem:[%s3 + $0x2c] sm:$0xf]
        %v830 = vld [vmem:[%s3 + $0x30] sm:$0xf]
        %v831 = vld [vmem:[%s3 + $0x34] sm:$0xf]
        %v832 = vld [vmem:[%s3 + $0x38] sm:$0xf]
        %v833 = vld [vmem:[%s3 + $0x3c] sm:$0xf]
        %v834 = vld [vmem:[%s4] sm:$0x1]
        %v836 = vlaneseq
        %v837 = vshrl.u32 %v836, 7
        %v838 = vsub.s32 0, %v837
        %v839 = vrot.slane %v834, %v838
        %v857 = vunpack.c.l.b16 %v818
        %v858 = vunpack.c.l.b16 %v819
        %v859 = vunpack.c.l.b16 %v820
        %v860 = vunpack.c.l.b16 %v821
        %v861 = vunpack.c.l.b16 %v822
        %v862 = vunpack.c.l.b16 %v823
        %v863 = vunpack.c.l.b16 %v824
        %v864 = vunpack.c.l.b16 %v825
        %v865 = vunpack.c.l.b16 %v826
        %v866 = vunpack.c.l.b16 %v827
        %v867 = vunpack.c.l.b16 %v828
        %v868 = vunpack.c.l.b16 %v829
        %v869 = vunpack.c.l.b16 %v830
        %v870 = vunpack.c.l.b16 %v831
        %v871 = vunpack.c.l.b16 %v832
        %v872 = vunpack.c.l.b16 %v833
        %v873 = vpack.c.b16 %v858, %v857
        %v874 = vpack.c.b16 %v860, %v859
        %v875 = vpack.c.b16 %v862, %v861
        %v876 = vpack.c.b16 %v864, %v863
        %v877 = vpack.c.b16 %v866, %v865
        %v878 = vpack.c.b16 %v868, %v867
        %v879 = vpack.c.b16 %v870, %v869
        %v880 = vpack.c.b16 %v872, %v871
        %889 = vmatprep.subr.bf16.mxu0 0
        %890 = vmatpush1.bf16.msra.mxu0 %v873
        %891 = vmatprep.subr.bf16.mxu0 0
        %892 = vmatpush1.bf16.msra.mxu0 %v874
        %893 = vmatprep.subr.bf16.mxu0 0
        %894 = vmatpush1.bf16.msra.mxu0 %v875
        %895 = vmatprep.subr.bf16.mxu0 0
        %896 = vmatpush1.bf16.msra.mxu0 %v876
        %897 = vmatprep.subr.bf16.mxu0 0
        %898 = vmatpush1.bf16.msra.mxu0 %v877
        %899 = vmatprep.subr.bf16.mxu0 0
        %900 = vmatpush1.bf16.msra.mxu0 %v878
        %901 = vmatprep.subr.bf16.mxu0 0
        %902 = vmatpush1.bf16.msra.mxu0 %v879
        %903 = vmatprep.subr.bf16.mxu0 0
        %904 = vmatpush1.bf16.msra.mxu0 %v880
        %905 = vmatprep.subr.bf16.mxu0 0
        %906 = vmatpush1.bf16.msra.mxu0 0
        %907 = vmatprep.subr.bf16.mxu0 0
        %908 = vmatpush1.bf16.msra.mxu0 0
        %909 = vmatprep.subr.bf16.mxu0 0
        %910 = vmatpush1.bf16.msra.mxu0 0
        %911 = vmatprep.subr.bf16.mxu0 0
        %912 = vmatpush1.bf16.msra.mxu0 0
        %913 = vmatprep.subr.bf16.mxu0 0
        %914 = vmatpush1.bf16.msra.mxu0 0
        %915 = vmatprep.subr.bf16.mxu0 0
        %916 = vmatpush1.bf16.msra.mxu0 0
        %917 = vmatprep.subr.bf16.mxu0 0
        %918 = vmatpush1.bf16.msra.mxu0 0
        %919 = vmatprep.subr.bf16.mxu0 0
        %920 = vmatpush1.bf16.msra.mxu0 0
        %921 = vmatprep.mubr.bf16.mxu0 0
        %922 = vmatmul.mubr.bf16.gmra.mrb[0].mxu0 %v808
        %v923 = vpop.f32.mrb[0].mxu0
        %v924 = vadd.f32 %v839, %v923
        %v925 = vpop.f32.mrb[0].mxu0
        %v926 = vpop.f32.mrb[0].mxu0
        %v927 = vadd.f32 %v839, %v926
        %v928 = vpop.f32.mrb[0].mxu0
        %929 = vmatprep.mubr.bf16.mxu0 0
        %930 = vmatmul.mubr.bf16.gmra.mrb[0].mxu0 %v809
        %v931 = vpop.f32.mrb[0].mxu0
        %v932 = vadd.f32 %v839, %v931
        %v933 = vpop.f32.mrb[0].mxu0
        %v934 = vpop.f32.mrb[0].mxu0
        %v935 = vadd.f32 %v839, %v934
        %v936 = vpop.f32.mrb[0].mxu0
        %937 = vmatprep.mubr.bf16.mxu0 0
        %938 = vmatmul.mubr.bf16.gmra.mrb[0].mxu0 %v810
        %v939 = vpop.f32.mrb[0].mxu0
        %v940 = vadd.f32 %v839, %v939
        %v941 = vpop.f32.mrb[0].mxu0
        %v942 = vpop.f32.mrb[0].mxu0
        %v943 = vadd.f32 %v839, %v942
        %v944 = vpop.f32.mrb[0].mxu0
        %945 = vmatprep.mubr.bf16.mxu0 0
        %946 = vmatmul.mubr.bf16.gmra.mrb[0].mxu0 %v811
        %v947 = vpop.f32.mrb[0].mxu0
        %v948 = vadd.f32 %v839, %v947
        %v949 = vpop.f32.mrb[0].mxu0
        %v950 = vpop.f32.mrb[0].mxu0
        %v951 = vadd.f32 %v839, %v950
        %v952 = vpop.f32.mrb[0].mxu0
        %953 = vmatprep.mubr.bf16.mxu0 0
        %954 = vmatmul.mubr.bf16.gmra.mrb[0].mxu0 %v812
        %v955 = vpop.f32.mrb[0].mxu0
        %v956 = vadd.f32 %v839, %v955
        %v957 = vpop.f32.mrb[0].mxu0
        %v958 = vpop.f32.mrb[0].mxu0
        %v959 = vadd.f32 %v839, %v958
        %v960 = vpop.f32.mrb[0].mxu0
        %961 = vmatprep.mubr.bf16.mxu0 0
        %962 = vmatmul.mubr.bf16.gmra.mrb[0].mxu0 %v813
        %v963 = vpop.f32.mrb[0].mxu0
        %v964 = vadd.f32 %v839, %v963
        %v965 = vpop.f32.mrb[0].mxu0
        %v966 = vpop.f32.mrb[0].mxu0
        %v967 = vadd.f32 %v839, %v966
        %v968 = vpop.f32.mrb[0].mxu0
        %969 = vmatprep.mubr.bf16.mxu0 0
        %970 = vmatmul.mubr.bf16.gmra.mrb[0].mxu0 %v814
        %v971 = vpop.f32.mrb[0].mxu0
        %v972 = vadd.f32 %v839, %v971
        %v973 = vpop.f32.mrb[0].mxu0
        %v974 = vpop.f32.mrb[0].mxu0
        %v975 = vadd.f32 %v839, %v974
        %v976 = vpop.f32.mrb[0].mxu0
        %977 = vmatprep.mubr.bf16.mxu0 0
        %978 = vmatmul.mubr.bf16.gmra.mrb[0].mxu0 %v815
        %v979 = vpop.f32.mrb[0].mxu0
        %v980 = vadd.f32 %v839, %v979
        %v981 = vpop.f32.mrb[0].mxu0
        %v982 = vpop.f32.mrb[0].mxu0
        %v983 = vadd.f32 %v839, %v982
        %v984 = vpop.f32.mrb[0].mxu0
        %985 = vmatprep.mubr.bf16.mxu0 0
        %986 = vmatmul.mubr.bf16.gmra.mrb[0].mxu0 %v816
        %v987 = vpop.f32.mrb[0].mxu0
        %v988 = vadd.f32 %v839, %v987
        %v989 = vpop.f32.mrb[0].mxu0
        %v990 = vpop.f32.mrb[0].mxu0
        %v991 = vadd.f32 %v839, %v990
        %v992 = vpop.f32.mrb[0].mxu0
        %993 = vmatprep.mubr.bf16.mxu0 0
        %994 = vmatmul.mubr.bf16.gmra.mrb[0].mxu0 %v817
        %v995 = vpop.f32.mrb[0].mxu0
        %v996 = vadd.f32 %v839, %v995
        %v997 = vpop.f32.mrb[0].mxu0
        %v998 = vpop.f32.mrb[0].mxu0
        %v999 = vadd.f32 %v839, %v998
        %v1000 = vpop.f32.mrb[0].mxu0
        %1001 = vdwg.mxu0
        %v1002 = vmax.f32 %v924, 0.0
        %v1003 = vmax.f32 %v927, 0.0
        %v1004 = vmax.f32 %v932, 0.0
        %v1005 = vmax.f32 %v935, 0.0
        %v1006 = vmax.f32 %v940, 0.0
        %v1007 = vmax.f32 %v943, 0.0
        %v1008 = vmax.f32 %v948, 0.0
        %v1009 = vmax.f32 %v951, 0.0
        %v1010 = vmax.f32 %v956, 0.0
        %v1011 = vmax.f32 %v959, 0.0
        %v1012 = vmax.f32 %v964, 0.0
        %v1013 = vmax.f32 %v967, 0.0
        %v1014 = vmax.f32 %v972, 0.0
        %v1015 = vmax.f32 %v975, 0.0
        %v1016 = vmax.f32 %v980, 0.0
        %v1017 = vmax.f32 %v983, 0.0
        %v1018 = vmax.f32 %v988, 0.0
        %v1019 = vmax.f32 %v991, 0.0
        %v1020 = vmax.f32 %v996, 0.0
        %v1021 = vmax.f32 %v999, 0.0
        %v1022 = vpack.c.bf16 %v1003, %v1002
        %v1023 = vpack.c.bf16 %v1005, %v1004
        %v1024 = vpack.c.bf16 %v1007, %v1006
        %v1025 = vpack.c.bf16 %v1009, %v1008
        %v1026 = vpack.c.bf16 %v1011, %v1010
        %v1027 = vpack.c.bf16 %v1013, %v1012
        %v1028 = vpack.c.bf16 %v1015, %v1014
        %v1029 = vpack.c.bf16 %v1017, %v1016
        %v1030 = vpack.c.bf16 %v1019, %v1018
        %v1031 = vpack.c.bf16 %v1021, %v1020
        %v1032 = vld [vmem:[%s5] sm:$0xf]
        %v1033 = vld [vmem:[%s5 + $0x4] sm:$0xf]
        %v1034 = vld [vmem:[%s5 + $0x8] sm:$0xf]
        %v1035 = vld [vmem:[%s5 + $0xc] sm:$0xf]
        %v1036 = vld [vmem:[%s5 + $0x10] sm:$0xf]
        %v1037 = vld [vmem:[%s5 + $0x14] sm:$0xf]
        %v1038 = vld [vmem:[%s5 + $0x18] sm:$0xf]
        %v1039 = vld [vmem:[%s5 + $0x1c] sm:$0xf]
        %v1040 = vld [vmem:[%s6] sm:$0x1]
        %v1042 = vlaneseq
        %v1043 = vshrl.u32 %v1042, 7
        %v1044 = vsub.s32 0, %v1043
        %v1045 = vrot.slane %v1040, %v1044
        %v1055 = vunpack.c.l.b16 %v1032
        %v1056 = vunpack.c.l.b16 %v1033
        %v1057 = vunpack.c.l.b16 %v1034
        %v1058 = vunpack.c.l.b16 %v1035
        %v1059 = vunpack.c.l.b16 %v1036
        %v1060 = vunpack.c.l.b16 %v1037
        %v1061 = vunpack.c.l.b16 %v1038
        %v1062 = vunpack.c.l.b16 %v1039
        %v1063 = vpack.c.b16 %v1056, %v1055
        %v1064 = vpack.c.b16 %v1058, %v1057
        %v1065 = vpack.c.b16 %v1060, %v1059
        %v1066 = vpack.c.b16 %v1062, %v1061
        %vm1071 = vcmask 523264
        %v1073 = vsel %vm1071, %v1022, 0
        %v1076 = vsel %vm1071, %v1023, 0
        %v1079 = vsel %vm1071, %v1024, 0
        %v1082 = vsel %vm1071, %v1025, 0
        %v1085 = vsel %vm1071, %v1026, 0
        %v1088 = vsel %vm1071, %v1027, 0
        %v1091 = vsel %vm1071, %v1028, 0
        %v1094 = vsel %vm1071, %v1029, 0
        %v1097 = vsel %vm1071, %v1030, 0
        %v1100 = vsel %vm1071, %v1031, 0
        %1102 = vmatprep.subr.bf16.mxu0 0
        %1103 = vmatpush1.bf16.msra.mxu0 %v1063
        %1104 = vmatprep.subr.bf16.mxu0 0
        %1105 = vmatpush1.bf16.msra.mxu0 %v1064
        %1106 = vmatprep.subr.bf16.mxu0 0
        %1107 = vmatpush1.bf16.msra.mxu0 %v1065
        %1108 = vmatprep.subr.bf16.mxu0 0
        %1109 = vmatpush1.bf16.msra.mxu0 %v1066
        %1110 = vmatprep.subr.bf16.mxu0 0
        %1111 = vmatpush1.bf16.msra.mxu0 0
        %1112 = vmatprep.subr.bf16.mxu0 0
        %1113 = vmatpush1.bf16.msra.mxu0 0
        %1114 = vmatprep.subr.bf16.mxu0 0
        %1115 = vmatpush1.bf16.msra.mxu0 0
        %1116 = vmatprep.subr.bf16.mxu0 0
        %1117 = vmatpush1.bf16.msra.mxu0 0
        %1118 = vmatprep.subr.bf16.mxu0 0
        %1119 = vmatpush1.bf16.msra.mxu0 0
        %1120 = vmatprep.subr.bf16.mxu0 0
        %1121 = vmatpush1.bf16.msra.mxu0 0
        %1122 = vmatprep.subr.bf16.mxu0 0
        %1123 = vmatpush1.bf16.msra.mxu0 0
        %1124 = vmatprep.subr.bf16.mxu0 0
        %1125 = vmatpush1.bf16.msra.mxu0 0
        %1126 = vmatprep.subr.bf16.mxu0 0
        %1127 = vmatpush1.bf16.msra.mxu0 0
        %1128 = vmatprep.subr.bf16.mxu0 0
        %1129 = vmatpush1.bf16.msra.mxu0 0
        %1130 = vmatprep.subr.bf16.mxu0 0
        %1131 = vmatpush1.bf16.msra.mxu0 0
        %1132 = vmatprep.subr.bf16.mxu0 0
        %1133 = vmatpush1.bf16.msra.mxu0 0
        %1134 = vmatprep.mubr.bf16.mxu0 0
        %1135 = vmatmul.mubr.bf16.gmra.mrb[0].mxu0 %v1073
        %v1136 = vpop.f32.mrb[0].mxu0
        %v1137 = vadd.f32 %v1045, %v1136
        %v1138 = vpop.f32.mrb[0].mxu0
        %v1139 = vpop.f32.mrb[0].mxu0
        %v1140 = vadd.f32 %v1045, %v1139
        %v1141 = vpop.f32.mrb[0].mxu0
        %1142 = vmatprep.mubr.bf16.mxu0 0
        %1143 = vmatmul.mubr.bf16.gmra.mrb[0].mxu0 %v1076
        %v1144 = vpop.f32.mrb[0].mxu0
        %v1145 = vadd.f32 %v1045, %v1144
        %v1146 = vpop.f32.mrb[0].mxu0
        %v1147 = vpop.f32.mrb[0].mxu0
        %v1148 = vadd.f32 %v1045, %v1147
        %v1149 = vpop.f32.mrb[0].mxu0
        %1150 = vmatprep.mubr.bf16.mxu0 0
        %1151 = vmatmul.mubr.bf16.gmra.mrb[0].mxu0 %v1079
        %v1152 = vpop.f32.mrb[0].mxu0
        %v1153 = vadd.f32 %v1045, %v1152
        %v1154 = vpop.f32.mrb[0].mxu0
        %v1155 = vpop.f32.mrb[0].mxu0
        %v1156 = vadd.f32 %v1045, %v1155
        %v1157 = vpop.f32.mrb[0].mxu0
        %1158 = vmatprep.mubr.bf16.mxu0 0
        %1159 = vmatmul.mubr.bf16.gmra.mrb[0].mxu0 %v1082
        %v1160 = vpop.f32.mrb[0].mxu0
        %v1161 = vadd.f32 %v1045, %v1160
        %v1162 = vpop.f32.mrb[0].mxu0
        %v1163 = vpop.f32.mrb[0].mxu0
        %v1164 = vadd.f32 %v1045, %v1163
        %v1165 = vpop.f32.mrb[0].mxu0
        %1166 = vmatprep.mubr.bf16.mxu0 0
        %1167 = vmatmul.mubr.bf16.gmra.mrb[0].mxu0 %v1085
        %v1168 = vpop.f32.mrb[0].mxu0
        %v1169 = vadd.f32 %v1045, %v1168
        %v1170 = vpop.f32.mrb[0].mxu0
        %v1171 = vpop.f32.mrb[0].mxu0
        %v1172 = vadd.f32 %v1045, %v1171
        %v1173 = vpop.f32.mrb[0].mxu0
        %1174 = vmatprep.mubr.bf16.mxu0 0
        %1175 = vmatmul.mubr.bf16.gmra.mrb[0].mxu0 %v1088
        %v1176 = vpop.f32.mrb[0].mxu0
        %v1177 = vadd.f32 %v1045, %v1176
        %v1178 = vpop.f32.mrb[0].mxu0
        %v1179 = vpop.f32.mrb[0].mxu0
        %v1180 = vadd.f32 %v1045, %v1179
        %v1181 = vpop.f32.mrb[0].mxu0
        %1182 = vmatprep.mubr.bf16.mxu0 0
        %1183 = vmatmul.mubr.bf16.gmra.mrb[0].mxu0 %v1091
        %v1184 = vpop.f32.mrb[0].mxu0
        %v1185 = vadd.f32 %v1045, %v1184
        %v1186 = vpop.f32.mrb[0].mxu0
        %v1187 = vpop.f32.mrb[0].mxu0
        %v1188 = vadd.f32 %v1045, %v1187
        %v1189 = vpop.f32.mrb[0].mxu0
        %1190 = vmatprep.mubr.bf16.mxu0 0
        %1191 = vmatmul.mubr.bf16.gmra.mrb[0].mxu0 %v1094
        %v1192 = vpop.f32.mrb[0].mxu0
        %v1193 = vadd.f32 %v1045, %v1192
        %v1194 = vpop.f32.mrb[0].mxu0
        %v1195 = vpop.f32.mrb[0].mxu0
        %v1196 = vadd.f32 %v1045, %v1195
        %v1197 = vpop.f32.mrb[0].mxu0
        %1198 = vmatprep.mubr.bf16.mxu0 0
        %1199 = vmatmul.mubr.bf16.gmra.mrb[0].mxu0 %v1097
        %v1200 = vpop.f32.mrb[0].mxu0
        %v1201 = vadd.f32 %v1045, %v1200
        %v1202 = vpop.f32.mrb[0].mxu0
        %v1203 = vpop.f32.mrb[0].mxu0
        %v1204 = vadd.f32 %v1045, %v1203
        %v1205 = vpop.f32.mrb[0].mxu0
        %1206 = vmatprep.mubr.bf16.mxu0 0
        %1207 = vmatmul.mubr.bf16.gmra.mrb[0].mxu0 %v1100
        %v1208 = vpop.f32.mrb[0].mxu0
        %v1209 = vadd.f32 %v1045, %v1208
        %v1210 = vpop.f32.mrb[0].mxu0
        %v1211 = vpop.f32.mrb[0].mxu0
        %v1212 = vadd.f32 %v1045, %v1211
        %v1213 = vpop.f32.mrb[0].mxu0
        %1214 = vdwg.mxu0
        %v1215 = vmax.f32 %v1137, 0.0
        %v1216 = vmax.f32 %v1140, 0.0
        %v1217 = vmax.f32 %v1145, 0.0
        %v1218 = vmax.f32 %v1148, 0.0
        %v1219 = vmax.f32 %v1153, 0.0
        %v1220 = vmax.f32 %v1156, 0.0
        %v1221 = vmax.f32 %v1161, 0.0
        %v1222 = vmax.f32 %v1164, 0.0
        %v1223 = vmax.f32 %v1169, 0.0
        %v1224 = vmax.f32 %v1172, 0.0
        %v1225 = vmax.f32 %v1177, 0.0
        %v1226 = vmax.f32 %v1180, 0.0
        %v1227 = vmax.f32 %v1185, 0.0
        %v1228 = vmax.f32 %v1188, 0.0
        %v1229 = vmax.f32 %v1193, 0.0
        %v1230 = vmax.f32 %v1196, 0.0
        %v1231 = vmax.f32 %v1201, 0.0
        %v1232 = vmax.f32 %v1204, 0.0
        %v1233 = vmax.f32 %v1209, 0.0
        %v1234 = vmax.f32 %v1212, 0.0
        %v1235 = vpack.c.bf16 %v1216, %v1215
        %v1236 = vpack.c.bf16 %v1218, %v1217
        %v1237 = vpack.c.bf16 %v1220, %v1219
        %v1238 = vpack.c.bf16 %v1222, %v1221
        %v1239 = vpack.c.bf16 %v1224, %v1223
        %v1240 = vpack.c.bf16 %v1226, %v1225
        %v1241 = vpack.c.bf16 %v1228, %v1227
        %v1242 = vpack.c.bf16 %v1230, %v1229
        %v1243 = vpack.c.bf16 %v1232, %v1231
        %v1244 = vpack.c.bf16 %v1234, %v1233
        %v1245 = vld [vmem:[%s7] sm:$0xf]
        %v1246 = vld [vmem:[%s7 + $0x4] sm:$0xf]
        %v1247 = vld [vmem:[%s7 + $0x8] sm:$0xf]
        %v1248 = vld [vmem:[%s7 + $0xc] sm:$0xf]
        %v1249 = vld [vmem:[%s8] sm:$0x1]
        %v1251 = vlaneseq
        %v1252 = vshrl.u32 %v1251, 7
        %v1253 = vsub.s32 0, %v1252
        %v1254 = vrot.slane %v1249, %v1253
        %v1260 = vunpack.c.l.b16 %v1245
        %v1261 = vunpack.c.l.b16 %v1246
        %v1262 = vunpack.c.l.b16 %v1247
        %v1263 = vunpack.c.l.b16 %v1248
        %v1264 = vpack.c.b16 %v1261, %v1260
        %v1265 = vpack.c.b16 %v1263, %v1262
        %v1269 = vsel %vm644, %v1235, 0
        %v1272 = vsel %vm644, %v1236, 0
        %v1275 = vsel %vm644, %v1237, 0
        %v1278 = vsel %vm644, %v1238, 0
        %v1281 = vsel %vm644, %v1239, 0
        %v1284 = vsel %vm644, %v1240, 0
        %v1287 = vsel %vm644, %v1241, 0
        %v1290 = vsel %vm644, %v1242, 0
        %v1293 = vsel %vm644, %v1243, 0
        %v1296 = vsel %vm644, %v1244, 0
        %1298 = vmatprep.subr.bf16.mxu0 0
        %1299 = vmatpush1.bf16.msra.mxu0 %v1264
        %1300 = vmatprep.subr.bf16.mxu0 0
        %1301 = vmatpush1.bf16.msra.mxu0 %v1265
        %1302 = vmatprep.subr.bf16.mxu0 0
        %1303 = vmatpush1.bf16.msra.mxu0 0
        %1304 = vmatprep.subr.bf16.mxu0 0
        %1305 = vmatpush1.bf16.msra.mxu0 0
        %1306 = vmatprep.subr.bf16.mxu0 0
        %1307 = vmatpush1.bf16.msra.mxu0 0
        %1308 = vmatprep.subr.bf16.mxu0 0
        %1309 = vmatpush1.bf16.msra.mxu0 0
        %1310 = vmatprep.subr.bf16.mxu0 0
        %1311 = vmatpush1.bf16.msra.mxu0 0
        %1312 = vmatprep.subr.bf16.mxu0 0
        %1313 = vmatpush1.bf16.msra.mxu0 0
        %1314 = vmatprep.subr.bf16.mxu0 0
        %1315 = vmatpush1.bf16.msra.mxu0 0
        %1316 = vmatprep.subr.bf16.mxu0 0
        %1317 = vmatpush1.bf16.msra.mxu0 0
        %1318 = vmatprep.subr.bf16.mxu0 0
        %1319 = vmatpush1.bf16.msra.mxu0 0
        %1320 = vmatprep.subr.bf16.mxu0 0
        %1321 = vmatpush1.bf16.msra.mxu0 0
        %1322 = vmatprep.subr.bf16.mxu0 0
        %1323 = vmatpush1.bf16.msra.mxu0 0
        %1324 = vmatprep.subr.bf16.mxu0 0
        %1325 = vmatpush1.bf16.msra.mxu0 0
        %1326 = vmatprep.subr.bf16.mxu0 0
        %1327 = vmatpush1.bf16.msra.mxu0 0
        %1328 = vmatprep.subr.bf16.mxu0 0
        %1329 = vmatpush1.bf16.msra.mxu0 0
        %1330 = vmatprep.mubr.bf16.mxu0 0
        %1331 = vmatmul.mubr.bf16.gmra.mrb[0].mxu0 %v1269
        %v1332 = vpop.f32.mrb[0].mxu0
        %v1333 = vadd.f32 %v1254, %v1332
        %v1334 = vpop.f32.mrb[0].mxu0
        %v1335 = vpop.f32.mrb[0].mxu0
        %v1336 = vadd.f32 %v1254, %v1335
        %v1337 = vpop.f32.mrb[0].mxu0
        %1338 = vmatprep.mubr.bf16.mxu0 0
        %1339 = vmatmul.mubr.bf16.gmra.mrb[0].mxu0 %v1272
        %v1340 = vpop.f32.mrb[0].mxu0
        %v1341 = vadd.f32 %v1254, %v1340
        %v1342 = vpop.f32.mrb[0].mxu0
        %v1343 = vpop.f32.mrb[0].mxu0
        %v1344 = vadd.f32 %v1254, %v1343
        %v1345 = vpop.f32.mrb[0].mxu0
        %1346 = vmatprep.mubr.bf16.mxu0 0
        %1347 = vmatmul.mubr.bf16.gmra.mrb[0].mxu0 %v1275
        %v1348 = vpop.f32.mrb[0].mxu0
        %v1349 = vadd.f32 %v1254, %v1348
        %v1350 = vpop.f32.mrb[0].mxu0
        %v1351 = vpop.f32.mrb[0].mxu0
        %v1352 = vadd.f32 %v1254, %v1351
        %v1353 = vpop.f32.mrb[0].mxu0
        %1354 = vmatprep.mubr.bf16.mxu0 0
        %1355 = vmatmul.mubr.bf16.gmra.mrb[0].mxu0 %v1278
        %v1356 = vpop.f32.mrb[0].mxu0
        %v1357 = vadd.f32 %v1254, %v1356
        %v1358 = vpop.f32.mrb[0].mxu0
        %v1359 = vpop.f32.mrb[0].mxu0
        %v1360 = vadd.f32 %v1254, %v1359
        %v1361 = vpop.f32.mrb[0].mxu0
        %1362 = vmatprep.mubr.bf16.mxu0 0
        %1363 = vmatmul.mubr.bf16.gmra.mrb[0].mxu0 %v1281
        %v1364 = vpop.f32.mrb[0].mxu0
        %v1365 = vadd.f32 %v1254, %v1364
        %v1366 = vpop.f32.mrb[0].mxu0
        %v1367 = vpop.f32.mrb[0].mxu0
        %v1368 = vadd.f32 %v1254, %v1367
        %v1369 = vpop.f32.mrb[0].mxu0
        %1370 = vmatprep.mubr.bf16.mxu0 0
        %1371 = vmatmul.mubr.bf16.gmra.mrb[0].mxu0 %v1284
        %v1372 = vpop.f32.mrb[0].mxu0
        %v1373 = vadd.f32 %v1254, %v1372
        %v1374 = vpop.f32.mrb[0].mxu0
        %v1375 = vpop.f32.mrb[0].mxu0
        %v1376 = vadd.f32 %v1254, %v1375
        %v1377 = vpop.f32.mrb[0].mxu0
        %1378 = vmatprep.mubr.bf16.mxu0 0
        %1379 = vmatmul.mubr.bf16.gmra.mrb[0].mxu0 %v1287
        %v1380 = vpop.f32.mrb[0].mxu0
        %v1381 = vadd.f32 %v1254, %v1380
        %v1382 = vpop.f32.mrb[0].mxu0
        %v1383 = vpop.f32.mrb[0].mxu0
        %v1384 = vadd.f32 %v1254, %v1383
        %v1385 = vpop.f32.mrb[0].mxu0
        %1386 = vmatprep.mubr.bf16.mxu0 0
        %1387 = vmatmul.mubr.bf16.gmra.mrb[0].mxu0 %v1290
        %v1388 = vpop.f32.mrb[0].mxu0
        %v1389 = vadd.f32 %v1254, %v1388
        %v1390 = vpop.f32.mrb[0].mxu0
        %v1391 = vpop.f32.mrb[0].mxu0
        %v1392 = vadd.f32 %v1254, %v1391
        %v1393 = vpop.f32.mrb[0].mxu0
        %1394 = vmatprep.mubr.bf16.mxu0 0
        %1395 = vmatmul.mubr.bf16.gmra.mrb[0].mxu0 %v1293
        %v1396 = vpop.f32.mrb[0].mxu0
        %v1397 = vadd.f32 %v1254, %v1396
        %v1398 = vpop.f32.mrb[0].mxu0
        %v1399 = vpop.f32.mrb[0].mxu0
        %v1400 = vadd.f32 %v1254, %v1399
        %v1401 = vpop.f32.mrb[0].mxu0
        %1402 = vmatprep.mubr.bf16.mxu0 0
        %1403 = vmatmul.mubr.bf16.gmra.mrb[0].mxu0 %v1296
        %v1404 = vpop.f32.mrb[0].mxu0
        %v1405 = vadd.f32 %v1254, %v1404
        %v1406 = vpop.f32.mrb[0].mxu0
        %v1407 = vpop.f32.mrb[0].mxu0
        %v1408 = vadd.f32 %v1254, %v1407
        %v1409 = vpop.f32.mrb[0].mxu0
        %1410 = vdwg.mxu0
        %v1411 = vpack.c.bf16 %v1336, %v1333
        %v1412 = vpack.c.bf16 %v1344, %v1341
        %v1413 = vpack.c.bf16 %v1352, %v1349
        %v1414 = vpack.c.bf16 %v1360, %v1357
        %v1415 = vpack.c.bf16 %v1368, %v1365
        %v1416 = vpack.c.bf16 %v1376, %v1373
        %v1417 = vpack.c.bf16 %v1384, %v1381
        %v1418 = vpack.c.bf16 %v1392, %v1389
        %v1419 = vpack.c.bf16 %v1400, %v1397
        %v1420 = vpack.c.bf16 %v1408, %v1405
        %v1421 = vld [vmem:[%s9] sm:$0xf]
        %v1422 = vld [vmem:[%s9 + $0x4] sm:$0xf]
        %v1423 = vld [vmem:[%s9 + $0x8] sm:$0xf]
        %v1424 = vld [vmem:[%s9 + $0xc] sm:$0xf]
        %v1425 = vld [vmem:[%s9 + $0x10] sm:$0xf]
        %v1426 = vld [vmem:[%s9 + $0x14] sm:$0xf]
        %v1427 = vld [vmem:[%s9 + $0x18] sm:$0xf]
        %v1428 = vld [vmem:[%s9 + $0x1c] sm:$0xf]
        %v1429 = vld [vmem:[%s9 + $0x20] sm:$0xf]
        %v1430 = vld [vmem:[%s9 + $0x24] sm:$0xf]
        %v1431 = vld [vmem:[%s9 + $0x28] sm:$0xf]
        %v1432 = vld [vmem:[%s9 + $0x2c] sm:$0xf]
        %v1433 = vld [vmem:[%s9 + $0x30] sm:$0xf]
        %v1434 = vld [vmem:[%s9 + $0x34] sm:$0xf]
        %v1435 = vld [vmem:[%s9 + $0x38] sm:$0xf]
        %v1436 = vld [vmem:[%s9 + $0x3c] sm:$0xf]
        %v1437 = vld [vmem:[%s10] sm:$0x1]
        %v1439 = vlaneseq
        %v1440 = vshrl.u32 %v1439, 7
        %v1441 = vsub.s32 0, %v1440
        %v1442 = vrot.slane %v1437, %v1441
        %v1460 = vunpack.c.l.b16 %v1421
        %v1461 = vunpack.c.l.b16 %v1422
        %v1462 = vunpack.c.l.b16 %v1423
        %v1463 = vunpack.c.l.b16 %v1424
        %v1464 = vunpack.c.l.b16 %v1425
        %v1465 = vunpack.c.l.b16 %v1426
        %v1466 = vunpack.c.l.b16 %v1427
        %v1467 = vunpack.c.l.b16 %v1428
        %v1468 = vunpack.c.l.b16 %v1429
        %v1469 = vunpack.c.l.b16 %v1430
        %v1470 = vunpack.c.l.b16 %v1431
        %v1471 = vunpack.c.l.b16 %v1432
        %v1472 = vunpack.c.l.b16 %v1433
        %v1473 = vunpack.c.l.b16 %v1434
        %v1474 = vunpack.c.l.b16 %v1435
        %v1475 = vunpack.c.l.b16 %v1436
        %v1476 = vpack.c.b16 %v1461, %v1460
        %v1477 = vpack.c.b16 %v1463, %v1462
        %v1478 = vpack.c.b16 %v1465, %v1464
        %v1479 = vpack.c.b16 %v1467, %v1466
        %v1480 = vpack.c.b16 %v1469, %v1468
        %v1481 = vpack.c.b16 %v1471, %v1470
        %v1482 = vpack.c.b16 %v1473, %v1472
        %v1483 = vpack.c.b16 %v1475, %v1474
        %1492 = vmatprep.subr.bf16.mxu0 0
        %1493 = vmatpush1.bf16.msra.mxu0 %v1476
        %1494 = vmatprep.subr.bf16.mxu0 0
        %1495 = vmatpush1.bf16.msra.mxu0 %v1477
        %1496 = vmatprep.subr.bf16.mxu0 0
        %1497 = vmatpush1.bf16.msra.mxu0 %v1478
        %1498 = vmatprep.subr.bf16.mxu0 0
        %1499 = vmatpush1.bf16.msra.mxu0 %v1479
        %1500 = vmatprep.subr.bf16.mxu0 0
        %1501 = vmatpush1.bf16.msra.mxu0 %v1480
        %1502 = vmatprep.subr.bf16.mxu0 0
        %1503 = vmatpush1.bf16.msra.mxu0 %v1481
        %1504 = vmatprep.subr.bf16.mxu0 0
        %1505 = vmatpush1.bf16.msra.mxu0 %v1482
        %1506 = vmatprep.subr.bf16.mxu0 0
        %1507 = vmatpush1.bf16.msra.mxu0 %v1483
        %1508 = vmatprep.subr.bf16.mxu0 0
        %1509 = vmatpush1.bf16.msra.mxu0 0
        %1510 = vmatprep.subr.bf16.mxu0 0
        %1511 = vmatpush1.bf16.msra.mxu0 0
        %1512 = vmatprep.subr.bf16.mxu0 0
        %1513 = vmatpush1.bf16.msra.mxu0 0
        %1514 = vmatprep.subr.bf16.mxu0 0
        %1515 = vmatpush1.bf16.msra.mxu0 0
        %1516 = vmatprep.subr.bf16.mxu0 0
        %1517 = vmatpush1.bf16.msra.mxu0 0
        %1518 = vmatprep.subr.bf16.mxu0 0
        %1519 = vmatpush1.bf16.msra.mxu0 0
        %1520 = vmatprep.subr.bf16.mxu0 0
        %1521 = vmatpush1.bf16.msra.mxu0 0
        %1522 = vmatprep.subr.bf16.mxu0 0
        %1523 = vmatpush1.bf16.msra.mxu0 0
        %1524 = vmatprep.mubr.bf16.mxu0 0
        %1525 = vmatmul.mubr.bf16.gmra.mrb[0].mxu0 %v1411
        %v1526 = vpop.f32.mrb[0].mxu0
        %v1527 = vadd.f32 %v1442, %v1526
        %v1528 = vpop.f32.mrb[0].mxu0
        %v1529 = vpop.f32.mrb[0].mxu0
        %v1530 = vadd.f32 %v1442, %v1529
        %v1531 = vpop.f32.mrb[0].mxu0
        %1532 = vmatprep.mubr.bf16.mxu0 0
        %1533 = vmatmul.mubr.bf16.gmra.mrb[0].mxu0 %v1412
        %v1534 = vpop.f32.mrb[0].mxu0
        %v1535 = vadd.f32 %v1442, %v1534
        %v1536 = vpop.f32.mrb[0].mxu0
        %v1537 = vpop.f32.mrb[0].mxu0
        %v1538 = vadd.f32 %v1442, %v1537
        %v1539 = vpop.f32.mrb[0].mxu0
        %1540 = vmatprep.mubr.bf16.mxu0 0
        %1541 = vmatmul.mubr.bf16.gmra.mrb[0].mxu0 %v1413
        %v1542 = vpop.f32.mrb[0].mxu0
        %v1543 = vadd.f32 %v1442, %v1542
        %v1544 = vpop.f32.mrb[0].mxu0
        %v1545 = vpop.f32.mrb[0].mxu0
        %v1546 = vadd.f32 %v1442, %v1545
        %v1547 = vpop.f32.mrb[0].mxu0
        %1548 = vmatprep.mubr.bf16.mxu0 0
        %1549 = vmatmul.mubr.bf16.gmra.mrb[0].mxu0 %v1414
        %v1550 = vpop.f32.mrb[0].mxu0
        %v1551 = vadd.f32 %v1442, %v1550
        %v1552 = vpop.f32.mrb[0].mxu0
        %v1553 = vpop.f32.mrb[0].mxu0
        %v1554 = vadd.f32 %v1442, %v1553
        %v1555 = vpop.f32.mrb[0].mxu0
        %1556 = vmatprep.mubr.bf16.mxu0 0
        %1557 = vmatmul.mubr.bf16.gmra.mrb[0].mxu0 %v1415
        %v1558 = vpop.f32.mrb[0].mxu0
        %v1559 = vadd.f32 %v1442, %v1558
        %v1560 = vpop.f32.mrb[0].mxu0
        %v1561 = vpop.f32.mrb[0].mxu0
        %v1562 = vadd.f32 %v1442, %v1561
        %v1563 = vpop.f32.mrb[0].mxu0
        %1564 = vmatprep.mubr.bf16.mxu0 0
        %1565 = vmatmul.mubr.bf16.gmra.mrb[0].mxu0 %v1416
        %v1566 = vpop.f32.mrb[0].mxu0
        %v1567 = vadd.f32 %v1442, %v1566
        %v1568 = vpop.f32.mrb[0].mxu0
        %v1569 = vpop.f32.mrb[0].mxu0
        %v1570 = vadd.f32 %v1442, %v1569
        %v1571 = vpop.f32.mrb[0].mxu0
        %1572 = vmatprep.mubr.bf16.mxu0 0
        %1573 = vmatmul.mubr.bf16.gmra.mrb[0].mxu0 %v1417
        %v1574 = vpop.f32.mrb[0].mxu0
        %v1575 = vadd.f32 %v1442, %v1574
        %v1576 = vpop.f32.mrb[0].mxu0
        %v1577 = vpop.f32.mrb[0].mxu0
        %v1578 = vadd.f32 %v1442, %v1577
        %v1579 = vpop.f32.mrb[0].mxu0
        %1580 = vmatprep.mubr.bf16.mxu0 0
        %1581 = vmatmul.mubr.bf16.gmra.mrb[0].mxu0 %v1418
        %v1582 = vpop.f32.mrb[0].mxu0
        %v1583 = vadd.f32 %v1442, %v1582
        %v1584 = vpop.f32.mrb[0].mxu0
        %v1585 = vpop.f32.mrb[0].mxu0
        %v1586 = vadd.f32 %v1442, %v1585
        %v1587 = vpop.f32.mrb[0].mxu0
        %1588 = vmatprep.mubr.bf16.mxu0 0
        %1589 = vmatmul.mubr.bf16.gmra.mrb[0].mxu0 %v1419
        %v1590 = vpop.f32.mrb[0].mxu0
        %v1591 = vadd.f32 %v1442, %v1590
        %v1592 = vpop.f32.mrb[0].mxu0
        %v1593 = vpop.f32.mrb[0].mxu0
        %v1594 = vadd.f32 %v1442, %v1593
        %v1595 = vpop.f32.mrb[0].mxu0
        %1596 = vmatprep.mubr.bf16.mxu0 0
        %1597 = vmatmul.mubr.bf16.gmra.mrb[0].mxu0 %v1420
        %v1598 = vpop.f32.mrb[0].mxu0
        %v1599 = vadd.f32 %v1442, %v1598
        %v1600 = vpop.f32.mrb[0].mxu0
        %v1601 = vpop.f32.mrb[0].mxu0
        %v1602 = vadd.f32 %v1442, %v1601
        %v1603 = vpop.f32.mrb[0].mxu0
        %1604 = vdwg.mxu0
        %v1605 = vmax.f32 %v1527, 0.0
        %v1606 = vmax.f32 %v1530, 0.0
        %v1607 = vmax.f32 %v1535, 0.0
        %v1608 = vmax.f32 %v1538, 0.0
        %v1609 = vmax.f32 %v1543, 0.0
        %v1610 = vmax.f32 %v1546, 0.0
        %v1611 = vmax.f32 %v1551, 0.0
        %v1612 = vmax.f32 %v1554, 0.0
        %v1613 = vmax.f32 %v1559, 0.0
        %v1614 = vmax.f32 %v1562, 0.0
        %v1615 = vmax.f32 %v1567, 0.0
        %v1616 = vmax.f32 %v1570, 0.0
        %v1617 = vmax.f32 %v1575, 0.0
        %v1618 = vmax.f32 %v1578, 0.0
        %v1619 = vmax.f32 %v1583, 0.0
        %v1620 = vmax.f32 %v1586, 0.0
        %v1621 = vmax.f32 %v1591, 0.0
        %v1622 = vmax.f32 %v1594, 0.0
        %v1623 = vmax.f32 %v1599, 0.0
        %v1624 = vmax.f32 %v1602, 0.0
        %v1625 = vpack.c.bf16 %v1606, %v1605
        %v1626 = vpack.c.bf16 %v1608, %v1607
        %v1627 = vpack.c.bf16 %v1610, %v1609
        %v1628 = vpack.c.bf16 %v1612, %v1611
        %v1629 = vpack.c.bf16 %v1614, %v1613
        %v1630 = vpack.c.bf16 %v1616, %v1615
        %v1631 = vpack.c.bf16 %v1618, %v1617
        %v1632 = vpack.c.bf16 %v1620, %v1619
        %v1633 = vpack.c.bf16 %v1622, %v1621
        %v1634 = vpack.c.bf16 %v1624, %v1623
        %v1635 = vld [vmem:[%s11] sm:$0xf]
        %v1636 = vld [vmem:[%s11 + $0x4] sm:$0xf]
        %v1637 = vld [vmem:[%s11 + $0x8] sm:$0xf]
        %v1638 = vld [vmem:[%s11 + $0xc] sm:$0xf]
        %v1639 = vld [vmem:[%s12] sm:$0x1]
        %v1641 = vlaneseq
        %v1642 = vshrl.u32 %v1641, 7
        %v1643 = vsub.s32 0, %v1642
        %v1644 = vrot.slane %v1639, %v1643
        %v1650 = vunpack.c.l.b16 %v1635
        %v1651 = vunpack.c.l.b16 %v1636
        %v1652 = vunpack.c.l.b16 %v1637
        %v1653 = vunpack.c.l.b16 %v1638
        %v1654 = vpack.c.b16 %v1651, %v1650
        %v1655 = vpack.c.b16 %v1653, %v1652
        %v1659 = vsel %vm644, %v1625, 0
        %v1662 = vsel %vm644, %v1626, 0
        %v1665 = vsel %vm644, %v1627, 0
        %v1668 = vsel %vm644, %v1628, 0
        %v1671 = vsel %vm644, %v1629, 0
        %v1674 = vsel %vm644, %v1630, 0
        %v1677 = vsel %vm644, %v1631, 0
        %v1680 = vsel %vm644, %v1632, 0
        %v1683 = vsel %vm644, %v1633, 0
        %v1686 = vsel %vm644, %v1634, 0
        %1688 = vmatprep.subr.bf16.mxu0 0
        %1689 = vmatpush1.bf16.msra.mxu0 %v1654
        %1690 = vmatprep.subr.bf16.mxu0 0
        %1691 = vmatpush1.bf16.msra.mxu0 %v1655
        %1692 = vmatprep.subr.bf16.mxu0 0
        %1693 = vmatpush1.bf16.msra.mxu0 0
        %1694 = vmatprep.subr.bf16.mxu0 0
        %1695 = vmatpush1.bf16.msra.mxu0 0
        %1696 = vmatprep.subr.bf16.mxu0 0
        %1697 = vmatpush1.bf16.msra.mxu0 0
        %1698 = vmatprep.subr.bf16.mxu0 0
        %1699 = vmatpush1.bf16.msra.mxu0 0
        %1700 = vmatprep.subr.bf16.mxu0 0
        %1701 = vmatpush1.bf16.msra.mxu0 0
        %1702 = vmatprep.subr.bf16.mxu0 0
        %1703 = vmatpush1.bf16.msra.mxu0 0
        %1704 = vmatprep.subr.bf16.mxu0 0
        %1705 = vmatpush1.bf16.msra.mxu0 0
        %1706 = vmatprep.subr.bf16.mxu0 0
        %1707 = vmatpush1.bf16.msra.mxu0 0
        %1708 = vmatprep.subr.bf16.mxu0 0
        %1709 = vmatpush1.bf16.msra.mxu0 0
        %1710 = vmatprep.subr.bf16.mxu0 0
        %1711 = vmatpush1.bf16.msra.mxu0 0
        %1712 = vmatprep.subr.bf16.mxu0 0
        %1713 = vmatpush1.bf16.msra.mxu0 0
        %1714 = vmatprep.subr.bf16.mxu0 0
        %1715 = vmatpush1.bf16.msra.mxu0 0
        %1716 = vmatprep.subr.bf16.mxu0 0
        %1717 = vmatpush1.bf16.msra.mxu0 0
        %1718 = vmatprep.subr.bf16.mxu0 0
        %1719 = vmatpush1.bf16.msra.mxu0 0
        %1720 = vmatprep.mubr.bf16.mxu0 0
        %1721 = vmatmul.mubr.bf16.gmra.mrb[0].mxu0 %v1659
        %v1722 = vpop.f32.mrb[0].mxu0
        %v1723 = vadd.f32 %v1644, %v1722
        %v1724 = vpop.f32.mrb[0].mxu0
        %v1725 = vpop.f32.mrb[0].mxu0
        %v1726 = vadd.f32 %v1644, %v1725
        %v1727 = vpop.f32.mrb[0].mxu0
        %1728 = vmatprep.mubr.bf16.mxu0 0
        %1729 = vmatmul.mubr.bf16.gmra.mrb[0].mxu0 %v1662
        %v1730 = vpop.f32.mrb[0].mxu0
        %v1731 = vadd.f32 %v1644, %v1730
        %v1732 = vpop.f32.mrb[0].mxu0
        %v1733 = vpop.f32.mrb[0].mxu0
        %v1734 = vadd.f32 %v1644, %v1733
        %v1735 = vpop.f32.mrb[0].mxu0
        %1736 = vmatprep.mubr.bf16.mxu0 0
        %1737 = vmatmul.mubr.bf16.gmra.mrb[0].mxu0 %v1665
        %v1738 = vpop.f32.mrb[0].mxu0
        %v1739 = vadd.f32 %v1644, %v1738
        %v1740 = vpop.f32.mrb[0].mxu0
        %v1741 = vpop.f32.mrb[0].mxu0
        %v1742 = vadd.f32 %v1644, %v1741
        %v1743 = vpop.f32.mrb[0].mxu0
        %1744 = vmatprep.mubr.bf16.mxu0 0
        %1745 = vmatmul.mubr.bf16.gmra.mrb[0].mxu0 %v1668
        %v1746 = vpop.f32.mrb[0].mxu0
        %v1747 = vadd.f32 %v1644, %v1746
        %v1748 = vpop.f32.mrb[0].mxu0
        %v1749 = vpop.f32.mrb[0].mxu0
        %v1750 = vadd.f32 %v1644, %v1749
        %v1751 = vpop.f32.mrb[0].mxu0
        %1752 = vmatprep.mubr.bf16.mxu0 0
        %1753 = vmatmul.mubr.bf16.gmra.mrb[0].mxu0 %v1671
        %v1754 = vpop.f32.mrb[0].mxu0
        %v1755 = vadd.f32 %v1644, %v1754
        %v1756 = vpop.f32.mrb[0].mxu0
        %v1757 = vpop.f32.mrb[0].mxu0
        %v1758 = vadd.f32 %v1644, %v1757
        %v1759 = vpop.f32.mrb[0].mxu0
        %1760 = vmatprep.mubr.bf16.mxu0 0
        %1761 = vmatmul.mubr.bf16.gmra.mrb[0].mxu0 %v1674
        %v1762 = vpop.f32.mrb[0].mxu0
        %v1763 = vadd.f32 %v1644, %v1762
        %v1764 = vpop.f32.mrb[0].mxu0
        %v1765 = vpop.f32.mrb[0].mxu0
        %v1766 = vadd.f32 %v1644, %v1765
        %v1767 = vpop.f32.mrb[0].mxu0
        %1768 = vmatprep.mubr.bf16.mxu0 0
        %1769 = vmatmul.mubr.bf16.gmra.mrb[0].mxu0 %v1677
        %v1770 = vpop.f32.mrb[0].mxu0
        %v1771 = vadd.f32 %v1644, %v1770
        %v1772 = vpop.f32.mrb[0].mxu0
        %v1773 = vpop.f32.mrb[0].mxu0
        %v1774 = vadd.f32 %v1644, %v1773
        %v1775 = vpop.f32.mrb[0].mxu0
        %1776 = vmatprep.mubr.bf16.mxu0 0
        %1777 = vmatmul.mubr.bf16.gmra.mrb[0].mxu0 %v1680
        %v1778 = vpop.f32.mrb[0].mxu0
        %v1779 = vadd.f32 %v1644, %v1778
        %v1780 = vpop.f32.mrb[0].mxu0
        %v1781 = vpop.f32.mrb[0].mxu0
        %v1782 = vadd.f32 %v1644, %v1781
        %v1783 = vpop.f32.mrb[0].mxu0
        %1784 = vmatprep.mubr.bf16.mxu0 0
        %1785 = vmatmul.mubr.bf16.gmra.mrb[0].mxu0 %v1683
        %v1786 = vpop.f32.mrb[0].mxu0
        %v1787 = vadd.f32 %v1644, %v1786
        %v1788 = vpop.f32.mrb[0].mxu0
        %v1789 = vpop.f32.mrb[0].mxu0
        %v1790 = vadd.f32 %v1644, %v1789
        %v1791 = vpop.f32.mrb[0].mxu0
        %1792 = vmatprep.mubr.bf16.mxu0 0
        %1793 = vmatmul.mubr.bf16.gmra.mrb[0].mxu0 %v1686
        %v1794 = vpop.f32.mrb[0].mxu0
        %v1795 = vadd.f32 %v1644, %v1794
        %v1796 = vpop.f32.mrb[0].mxu0
        %v1797 = vpop.f32.mrb[0].mxu0
        %v1798 = vadd.f32 %v1644, %v1797
        %v1799 = vpop.f32.mrb[0].mxu0
        %1800 = vdwg.mxu0
        %v1801 = vmax.f32 %v1723, 0.0
        %v1802 = vmax.f32 %v1726, 0.0
        %v1803 = vmax.f32 %v1731, 0.0
        %v1804 = vmax.f32 %v1734, 0.0
        %v1805 = vmax.f32 %v1739, 0.0
        %v1806 = vmax.f32 %v1742, 0.0
        %v1807 = vmax.f32 %v1747, 0.0
        %v1808 = vmax.f32 %v1750, 0.0
        %v1809 = vmax.f32 %v1755, 0.0
        %v1810 = vmax.f32 %v1758, 0.0
        %v1811 = vmax.f32 %v1763, 0.0
        %v1812 = vmax.f32 %v1766, 0.0
        %v1813 = vmax.f32 %v1771, 0.0
        %v1814 = vmax.f32 %v1774, 0.0
        %v1815 = vmax.f32 %v1779, 0.0
        %v1816 = vmax.f32 %v1782, 0.0
        %v1817 = vmax.f32 %v1787, 0.0
        %v1818 = vmax.f32 %v1790, 0.0
        %v1819 = vmax.f32 %v1795, 0.0
        %v1820 = vmax.f32 %v1798, 0.0
        %v1821 = vpack.c.bf16 %v1802, %v1801
        %v1822 = vpack.c.bf16 %v1804, %v1803
        %v1823 = vpack.c.bf16 %v1806, %v1805
        %v1824 = vpack.c.bf16 %v1808, %v1807
        %v1825 = vpack.c.bf16 %v1810, %v1809
        %v1826 = vpack.c.bf16 %v1812, %v1811
        %v1827 = vpack.c.bf16 %v1814, %v1813
        %v1828 = vpack.c.bf16 %v1816, %v1815
        %v1829 = vpack.c.bf16 %v1818, %v1817
        %v1830 = vpack.c.bf16 %v1820, %v1819
        %v1831 = vld [vmem:[%s13] sm:$0xf]
        %v1832 = vld [vmem:[%s13 + $0x4] sm:$0xf]
        %v1833 = vld [vmem:[%s13 + $0x8] sm:$0xf]
        %v1834 = vld [vmem:[%s13 + $0xc] sm:$0xf]
        %v1835 = vld [vmem:[%s13 + $0x10] sm:$0xf]
        %v1836 = vld [vmem:[%s13 + $0x14] sm:$0xf]
        %v1837 = vld [vmem:[%s13 + $0x18] sm:$0xf]
        %v1838 = vld [vmem:[%s13 + $0x1c] sm:$0xf]
        %v1839 = vld [vmem:[%s14] sm:$0x1]
        %v1841 = vlaneseq
        %v1842 = vshrl.u32 %v1841, 7
        %v1843 = vsub.s32 0, %v1842
        %v1844 = vrot.slane %v1839, %v1843
        %v1854 = vunpack.c.l.b16 %v1831
        %v1855 = vunpack.c.l.b16 %v1832
        %v1856 = vunpack.c.l.b16 %v1833
        %v1857 = vunpack.c.l.b16 %v1834
        %v1858 = vunpack.c.l.b16 %v1835
        %v1859 = vunpack.c.l.b16 %v1836
        %v1860 = vunpack.c.l.b16 %v1837
        %v1861 = vunpack.c.l.b16 %v1838
        %v1862 = vpack.c.b16 %v1855, %v1854
        %v1863 = vpack.c.b16 %v1857, %v1856
        %v1864 = vpack.c.b16 %v1859, %v1858
        %v1865 = vpack.c.b16 %v1861, %v1860
        %v1871 = vsel %vm1071, %v1821, 0
        %v1874 = vsel %vm1071, %v1822, 0
        %v1877 = vsel %vm1071, %v1823, 0
        %v1880 = vsel %vm1071, %v1824, 0
        %v1883 = vsel %vm1071, %v1825, 0
        %v1886 = vsel %vm1071, %v1826, 0
        %v1889 = vsel %vm1071, %v1827, 0
        %v1892 = vsel %vm1071, %v1828, 0
        %v1895 = vsel %vm1071, %v1829, 0
        %v1898 = vsel %vm1071, %v1830, 0
        %1900 = vmatprep.subr.bf16.mxu0 0
        %1901 = vmatpush1.bf16.msra.mxu0 %v1862
        %1902 = vmatprep.subr.bf16.mxu0 0
        %1903 = vmatpush1.bf16.msra.mxu0 %v1863
        %1904 = vmatprep.subr.bf16.mxu0 0
        %1905 = vmatpush1.bf16.msra.mxu0 %v1864
        %1906 = vmatprep.subr.bf16.mxu0 0
        %1907 = vmatpush1.bf16.msra.mxu0 %v1865
        %1908 = vmatprep.subr.bf16.mxu0 0
        %1909 = vmatpush1.bf16.msra.mxu0 0
        %1910 = vmatprep.subr.bf16.mxu0 0
        %1911 = vmatpush1.bf16.msra.mxu0 0
        %1912 = vmatprep.subr.bf16.mxu0 0
        %1913 = vmatpush1.bf16.msra.mxu0 0
        %1914 = vmatprep.subr.bf16.mxu0 0
        %1915 = vmatpush1.bf16.msra.mxu0 0
        %1916 = vmatprep.subr.bf16.mxu0 0
        %1917 = vmatpush1.bf16.msra.mxu0 0
        %1918 = vmatprep.subr.bf16.mxu0 0
        %1919 = vmatpush1.bf16.msra.mxu0 0
        %1920 = vmatprep.subr.bf16.mxu0 0
        %1921 = vmatpush1.bf16.msra.mxu0 0
        %1922 = vmatprep.subr.bf16.mxu0 0
        %1923 = vmatpush1.bf16.msra.mxu0 0
        %1924 = vmatprep.subr.bf16.mxu0 0
        %1925 = vmatpush1.bf16.msra.mxu0 0
        %1926 = vmatprep.subr.bf16.mxu0 0
        %1927 = vmatpush1.bf16.msra.mxu0 0
        %1928 = vmatprep.subr.bf16.mxu0 0
        %1929 = vmatpush1.bf16.msra.mxu0 0
        %1930 = vmatprep.subr.bf16.mxu0 0
        %1931 = vmatpush1.bf16.msra.mxu0 0
        %1932 = vmatprep.mubr.bf16.mxu0 0
        %1933 = vmatmul.mubr.bf16.gmra.mrb[0].mxu0 %v1871
        %v1934 = vpop.f32.mrb[0].mxu0
        %v1935 = vadd.f32 %v1844, %v1934
        %v1936 = vpop.f32.mrb[0].mxu0
        %v1937 = vpop.f32.mrb[0].mxu0
        %v1938 = vadd.f32 %v1844, %v1937
        %v1939 = vpop.f32.mrb[0].mxu0
        %1940 = vmatprep.mubr.bf16.mxu0 0
        %1941 = vmatmul.mubr.bf16.gmra.mrb[0].mxu0 %v1874
        %v1942 = vpop.f32.mrb[0].mxu0
        %v1943 = vadd.f32 %v1844, %v1942
        %v1944 = vpop.f32.mrb[0].mxu0
        %v1945 = vpop.f32.mrb[0].mxu0
        %v1946 = vadd.f32 %v1844, %v1945
        %v1947 = vpop.f32.mrb[0].mxu0
        %1948 = vmatprep.mubr.bf16.mxu0 0
        %1949 = vmatmul.mubr.bf16.gmra.mrb[0].mxu0 %v1877
        %v1950 = vpop.f32.mrb[0].mxu0
        %v1951 = vadd.f32 %v1844, %v1950
        %v1952 = vpop.f32.mrb[0].mxu0
        %v1953 = vpop.f32.mrb[0].mxu0
        %v1954 = vadd.f32 %v1844, %v1953
        %v1955 = vpop.f32.mrb[0].mxu0
        %1956 = vmatprep.mubr.bf16.mxu0 0
        %1957 = vmatmul.mubr.bf16.gmra.mrb[0].mxu0 %v1880
        %v1958 = vpop.f32.mrb[0].mxu0
        %v1959 = vadd.f32 %v1844, %v1958
        %v1960 = vpop.f32.mrb[0].mxu0
        %v1961 = vpop.f32.mrb[0].mxu0
        %v1962 = vadd.f32 %v1844, %v1961
        %v1963 = vpop.f32.mrb[0].mxu0
        %1964 = vmatprep.mubr.bf16.mxu0 0
        %1965 = vmatmul.mubr.bf16.gmra.mrb[0].mxu0 %v1883
        %v1966 = vpop.f32.mrb[0].mxu0
        %v1967 = vadd.f32 %v1844, %v1966
        %v1968 = vpop.f32.mrb[0].mxu0
        %v1969 = vpop.f32.mrb[0].mxu0
        %v1970 = vadd.f32 %v1844, %v1969
        %v1971 = vpop.f32.mrb[0].mxu0
        %1972 = vmatprep.mubr.bf16.mxu0 0
        %1973 = vmatmul.mubr.bf16.gmra.mrb[0].mxu0 %v1886
        %v1974 = vpop.f32.mrb[0].mxu0
        %v1975 = vadd.f32 %v1844, %v1974
        %v1976 = vpop.f32.mrb[0].mxu0
        %v1977 = vpop.f32.mrb[0].mxu0
        %v1978 = vadd.f32 %v1844, %v1977
        %v1979 = vpop.f32.mrb[0].mxu0
        %1980 = vmatprep.mubr.bf16.mxu0 0
        %1981 = vmatmul.mubr.bf16.gmra.mrb[0].mxu0 %v1889
        %v1982 = vpop.f32.mrb[0].mxu0
        %v1983 = vadd.f32 %v1844, %v1982
        %v1984 = vpop.f32.mrb[0].mxu0
        %v1985 = vpop.f32.mrb[0].mxu0
        %v1986 = vadd.f32 %v1844, %v1985
        %v1987 = vpop.f32.mrb[0].mxu0
        %1988 = vmatprep.mubr.bf16.mxu0 0
        %1989 = vmatmul.mubr.bf16.gmra.mrb[0].mxu0 %v1892
        %v1990 = vpop.f32.mrb[0].mxu0
        %v1991 = vadd.f32 %v1844, %v1990
        %v1992 = vpop.f32.mrb[0].mxu0
        %v1993 = vpop.f32.mrb[0].mxu0
        %v1994 = vadd.f32 %v1844, %v1993
        %v1995 = vpop.f32.mrb[0].mxu0
        %1996 = vmatprep.mubr.bf16.mxu0 0
        %1997 = vmatmul.mubr.bf16.gmra.mrb[0].mxu0 %v1895
        %v1998 = vpop.f32.mrb[0].mxu0
        %v1999 = vadd.f32 %v1844, %v1998
        %v2000 = vpop.f32.mrb[0].mxu0
        %v2001 = vpop.f32.mrb[0].mxu0
        %v2002 = vadd.f32 %v1844, %v2001
        %v2003 = vpop.f32.mrb[0].mxu0
        %2004 = vmatprep.mubr.bf16.mxu0 0
        %2005 = vmatmul.mubr.bf16.gmra.mrb[0].mxu0 %v1898
        %v2006 = vpop.f32.mrb[0].mxu0
        %v2007 = vadd.f32 %v1844, %v2006
        %v2008 = vpop.f32.mrb[0].mxu0
        %v2009 = vpop.f32.mrb[0].mxu0
        %v2010 = vadd.f32 %v1844, %v2009
        %v2011 = vpop.f32.mrb[0].mxu0
        %2012 = vdwg.mxu0
        %v2013 = vmax.f32 %v1935, 0.0
        %v2014 = vmax.f32 %v1938, 0.0
        %v2015 = vmax.f32 %v1943, 0.0
        %v2016 = vmax.f32 %v1946, 0.0
        %v2017 = vmax.f32 %v1951, 0.0
        %v2018 = vmax.f32 %v1954, 0.0
        %v2019 = vmax.f32 %v1959, 0.0
        %v2020 = vmax.f32 %v1962, 0.0
        %v2021 = vmax.f32 %v1967, 0.0
        %v2022 = vmax.f32 %v1970, 0.0
        %v2023 = vmax.f32 %v1975, 0.0
        %v2024 = vmax.f32 %v1978, 0.0
        %v2025 = vmax.f32 %v1983, 0.0
        %v2026 = vmax.f32 %v1986, 0.0
        %v2027 = vmax.f32 %v1991, 0.0
        %v2028 = vmax.f32 %v1994, 0.0
        %v2029 = vmax.f32 %v1999, 0.0
        %v2030 = vmax.f32 %v2002, 0.0
        %v2031 = vmax.f32 %v2007, 0.0
        %v2032 = vmax.f32 %v2010, 0.0
        %v2033 = vpack.c.bf16 %v2014, %v2013
        %v2034 = vpack.c.bf16 %v2016, %v2015
        %v2035 = vpack.c.bf16 %v2018, %v2017
        %v2036 = vpack.c.bf16 %v2020, %v2019
        %v2037 = vpack.c.bf16 %v2022, %v2021
        %v2038 = vpack.c.bf16 %v2024, %v2023
        %v2039 = vpack.c.bf16 %v2026, %v2025
        %v2040 = vpack.c.bf16 %v2028, %v2027
        %v2041 = vpack.c.bf16 %v2030, %v2029
        %v2042 = vpack.c.bf16 %v2032, %v2031
        %v2043 = vld [vmem:[%s15] sm:$0xf]
        %v2044 = vld [vmem:[%s15 + $0x4] sm:$0xf]
        %v2045 = vld [vmem:[%s15 + $0x8] sm:$0xf]
        %v2046 = vld [vmem:[%s15 + $0xc] sm:$0xf]
        %v2047 = vld [vmem:[%s15 + $0x10] sm:$0xf]
        %v2048 = vld [vmem:[%s15 + $0x14] sm:$0xf]
        %v2049 = vld [vmem:[%s15 + $0x18] sm:$0xf]
        %v2050 = vld [vmem:[%s15 + $0x1c] sm:$0xf]
        %v2051 = vld [vmem:[%s15 + $0x20] sm:$0xf]
        %v2052 = vld [vmem:[%s15 + $0x24] sm:$0xf]
        %v2053 = vld [vmem:[%s15 + $0x28] sm:$0xf]
        %v2054 = vld [vmem:[%s15 + $0x2c] sm:$0xf]
        %v2055 = vld [vmem:[%s15 + $0x30] sm:$0xf]
        %v2056 = vld [vmem:[%s15 + $0x34] sm:$0xf]
        %v2057 = vld [vmem:[%s15 + $0x38] sm:$0xf]
        %v2058 = vld [vmem:[%s15 + $0x3c] sm:$0xf]
        %v2059 = vld [vmem:[%s16] sm:$0x1]
        %v2061 = vlaneseq
        %v2062 = vshrl.u32 %v2061, 7
        %v2063 = vsub.s32 0, %v2062
        %v2064 = vrot.slane %v2059, %v2063
        %v2082 = vunpack.c.l.b16 %v2043
        %v2083 = vunpack.c.l.b16 %v2044
        %v2084 = vunpack.c.l.b16 %v2045
        %v2085 = vunpack.c.l.b16 %v2046
        %v2086 = vunpack.c.l.b16 %v2047
        %v2087 = vunpack.c.l.b16 %v2048
        %v2088 = vunpack.c.l.b16 %v2049
        %v2089 = vunpack.c.l.b16 %v2050
        %v2090 = vunpack.c.l.b16 %v2051
        %v2091 = vunpack.c.l.b16 %v2052
        %v2092 = vunpack.c.l.b16 %v2053
        %v2093 = vunpack.c.l.b16 %v2054
        %v2094 = vunpack.c.l.b16 %v2055
        %v2095 = vunpack.c.l.b16 %v2056
        %v2096 = vunpack.c.l.b16 %v2057
        %v2097 = vunpack.c.l.b16 %v2058
        %v2098 = vpack.c.b16 %v2083, %v2082
        %v2099 = vpack.c.b16 %v2085, %v2084
        %v2100 = vpack.c.b16 %v2087, %v2086
        %v2101 = vpack.c.b16 %v2089, %v2088
        %v2102 = vpack.c.b16 %v2091, %v2090
        %v2103 = vpack.c.b16 %v2093, %v2092
        %v2104 = vpack.c.b16 %v2095, %v2094
        %v2105 = vpack.c.b16 %v2097, %v2096
        %2114 = vmatprep.subr.bf16.mxu0 0
        %2115 = vmatpush1.bf16.msra.mxu0 %v2098
        %2116 = vmatprep.subr.bf16.mxu0 0
        %2117 = vmatpush1.bf16.msra.mxu0 %v2099
        %2118 = vmatprep.subr.bf16.mxu0 0
        %2119 = vmatpush1.bf16.msra.mxu0 %v2100
        %2120 = vmatprep.subr.bf16.mxu0 0
        %2121 = vmatpush1.bf16.msra.mxu0 %v2101
        %2122 = vmatprep.subr.bf16.mxu0 0
        %2123 = vmatpush1.bf16.msra.mxu0 %v2102
        %2124 = vmatprep.subr.bf16.mxu0 0
        %2125 = vmatpush1.bf16.msra.mxu0 %v2103
        %2126 = vmatprep.subr.bf16.mxu0 0
        %2127 = vmatpush1.bf16.msra.mxu0 %v2104
        %2128 = vmatprep.subr.bf16.mxu0 0
        %2129 = vmatpush1.bf16.msra.mxu0 %v2105
        %2130 = vmatprep.subr.bf16.mxu0 0
        %2131 = vmatpush1.bf16.msra.mxu0 0
        %2132 = vmatprep.subr.bf16.mxu0 0
        %2133 = vmatpush1.bf16.msra.mxu0 0
        %2134 = vmatprep.subr.bf16.mxu0 0
        %2135 = vmatpush1.bf16.msra.mxu0 0
        %2136 = vmatprep.subr.bf16.mxu0 0
        %2137 = vmatpush1.bf16.msra.mxu0 0
        %2138 = vmatprep.subr.bf16.mxu0 0
        %2139 = vmatpush1.bf16.msra.mxu0 0
        %2140 = vmatprep.subr.bf16.mxu0 0
        %2141 = vmatpush1.bf16.msra.mxu0 0
        %2142 = vmatprep.subr.bf16.mxu0 0
        %2143 = vmatpush1.bf16.msra.mxu0 0
        %2144 = vmatprep.subr.bf16.mxu0 0
        %2145 = vmatpush1.bf16.msra.mxu0 0
        %2146 = vmatprep.mubr.bf16.mxu0 0
        %2147 = vmatmul.mubr.bf16.gmra.mrb[0].mxu0 %v2033
        %v2148 = vpop.f32.mrb[0].mxu0
        %v2149 = vadd.f32 %v2064, %v2148
        %v2150 = vpop.f32.mrb[0].mxu0
        %v2151 = vpop.f32.mrb[0].mxu0
        %v2152 = vadd.f32 %v2064, %v2151
        %v2153 = vpop.f32.mrb[0].mxu0
        %2154 = vmatprep.mubr.bf16.mxu0 0
        %2155 = vmatmul.mubr.bf16.gmra.mrb[0].mxu0 %v2034
        %v2156 = vpop.f32.mrb[0].mxu0
        %v2157 = vadd.f32 %v2064, %v2156
        %v2158 = vpop.f32.mrb[0].mxu0
        %v2159 = vpop.f32.mrb[0].mxu0
        %v2160 = vadd.f32 %v2064, %v2159
        %v2161 = vpop.f32.mrb[0].mxu0
        %2162 = vmatprep.mubr.bf16.mxu0 0
        %2163 = vmatmul.mubr.bf16.gmra.mrb[0].mxu0 %v2035
        %v2164 = vpop.f32.mrb[0].mxu0
        %v2165 = vadd.f32 %v2064, %v2164
        %v2166 = vpop.f32.mrb[0].mxu0
        %v2167 = vpop.f32.mrb[0].mxu0
        %v2168 = vadd.f32 %v2064, %v2167
        %v2169 = vpop.f32.mrb[0].mxu0
        %2170 = vmatprep.mubr.bf16.mxu0 0
        %2171 = vmatmul.mubr.bf16.gmra.mrb[0].mxu0 %v2036
        %v2172 = vpop.f32.mrb[0].mxu0
        %v2173 = vadd.f32 %v2064, %v2172
        %v2174 = vpop.f32.mrb[0].mxu0
        %v2175 = vpop.f32.mrb[0].mxu0
        %v2176 = vadd.f32 %v2064, %v2175
        %v2177 = vpop.f32.mrb[0].mxu0
        %2178 = vmatprep.mubr.bf16.mxu0 0
        %2179 = vmatmul.mubr.bf16.gmra.mrb[0].mxu0 %v2037
        %v2180 = vpop.f32.mrb[0].mxu0
        %v2181 = vadd.f32 %v2064, %v2180
        %v2182 = vpop.f32.mrb[0].mxu0
        %v2183 = vpop.f32.mrb[0].mxu0
        %v2184 = vadd.f32 %v2064, %v2183
        %v2185 = vpop.f32.mrb[0].mxu0
        %2186 = vmatprep.mubr.bf16.mxu0 0
        %2187 = vmatmul.mubr.bf16.gmra.mrb[0].mxu0 %v2038
        %v2188 = vpop.f32.mrb[0].mxu0
        %v2189 = vadd.f32 %v2064, %v2188
        %v2190 = vpop.f32.mrb[0].mxu0
        %v2191 = vpop.f32.mrb[0].mxu0
        %v2192 = vadd.f32 %v2064, %v2191
        %v2193 = vpop.f32.mrb[0].mxu0
        %2194 = vmatprep.mubr.bf16.mxu0 0
        %2195 = vmatmul.mubr.bf16.gmra.mrb[0].mxu0 %v2039
        %v2196 = vpop.f32.mrb[0].mxu0
        %v2197 = vadd.f32 %v2064, %v2196
        %v2198 = vpop.f32.mrb[0].mxu0
        %v2199 = vpop.f32.mrb[0].mxu0
        %v2200 = vadd.f32 %v2064, %v2199
        %v2201 = vpop.f32.mrb[0].mxu0
        %2202 = vmatprep.mubr.bf16.mxu0 0
        %2203 = vmatmul.mubr.bf16.gmra.mrb[0].mxu0 %v2040
        %v2204 = vpop.f32.mrb[0].mxu0
        %v2205 = vadd.f32 %v2064, %v2204
        %v2206 = vpop.f32.mrb[0].mxu0
        %v2207 = vpop.f32.mrb[0].mxu0
        %v2208 = vadd.f32 %v2064, %v2207
        %v2209 = vpop.f32.mrb[0].mxu0
        %2210 = vmatprep.mubr.bf16.mxu0 0
        %2211 = vmatmul.mubr.bf16.gmra.mrb[0].mxu0 %v2041
        %v2212 = vpop.f32.mrb[0].mxu0
        %v2213 = vadd.f32 %v2064, %v2212
        %v2214 = vpop.f32.mrb[0].mxu0
        %v2215 = vpop.f32.mrb[0].mxu0
        %v2216 = vadd.f32 %v2064, %v2215
        %v2217 = vpop.f32.mrb[0].mxu0
        %2218 = vmatprep.mubr.bf16.mxu0 0
        %2219 = vmatmul.mubr.bf16.gmra.mrb[0].mxu0 %v2042
        %v2220 = vpop.f32.mrb[0].mxu0
        %v2221 = vadd.f32 %v2064, %v2220
        %v2222 = vpop.f32.mrb[0].mxu0
        %v2223 = vpop.f32.mrb[0].mxu0
        %v2224 = vadd.f32 %v2064, %v2223
        %v2225 = vpop.f32.mrb[0].mxu0
        %2226 = vdwg.mxu0
        %v2227 = vadd.f32 %v1333, %v2149
        %v2228 = vadd.f32 %v1336, %v2152
        %v2229 = vadd.f32 %v1341, %v2157
        %v2230 = vadd.f32 %v1344, %v2160
        %v2231 = vadd.f32 %v1349, %v2165
        %v2232 = vadd.f32 %v1352, %v2168
        %v2233 = vadd.f32 %v1357, %v2173
        %v2234 = vadd.f32 %v1360, %v2176
        %v2235 = vadd.f32 %v1365, %v2181
        %v2236 = vadd.f32 %v1368, %v2184
        %v2237 = vadd.f32 %v1373, %v2189
        %v2238 = vadd.f32 %v1376, %v2192
        %v2239 = vadd.f32 %v1381, %v2197
        %v2240 = vadd.f32 %v1384, %v2200
        %v2241 = vadd.f32 %v1389, %v2205
        %v2242 = vadd.f32 %v1392, %v2208
        %v2243 = vadd.f32 %v1397, %v2213
        %v2244 = vadd.f32 %v1400, %v2216
        %v2245 = vadd.f32 %v1405, %v2221
        %v2246 = vadd.f32 %v1408, %v2224
        %2247 = vst [vmem:[%s542] sm:$0xff] %v2227
        %2248 = vst [vmem:[%s542 + $0x8] sm:$0xff] %v2228
        %2249 = vst [vmem:[%s542 + $0x10] sm:$0xff] %v2229
        %2250 = vst [vmem:[%s542 + $0x18] sm:$0xff] %v2230
        %2251 = vst [vmem:[%s542 + $0x20] sm:$0xff] %v2231
        %2252 = vst [vmem:[%s542 + $0x28] sm:$0xff] %v2232
        %2253 = vst [vmem:[%s542 + $0x30] sm:$0xff] %v2233
        %2254 = vst [vmem:[%s542 + $0x38] sm:$0xff] %v2234
        %2255 = vst [vmem:[%s542 + $0x40] sm:$0xff] %v2235
        %2256 = vst [vmem:[%s542 + $0x48] sm:$0xff] %v2236
        %2257 = vst [vmem:[%s542 + $0x50] sm:$0xff] %v2237
        %2258 = vst [vmem:[%s542 + $0x58] sm:$0xff] %v2238
        %2259 = vst [vmem:[%s542 + $0x60] sm:$0xff] %v2239
        %2260 = vst [vmem:[%s542 + $0x68] sm:$0xff] %v2240
        %2261 = vst [vmem:[%s542 + $0x70] sm:$0xff] %v2241
        %2262 = vst [vmem:[%s542 + $0x78] sm:$0xff] %v2242
        %2263 = vst [vmem:[%s542 + $0x80] sm:$0xff] %v2243
        %2264 = vst [vmem:[%s542 + $0x88] sm:$0xff] %v2244
        %2265 = vst [vmem:[%s542 + $0x90] sm:$0xff] %v2245
        %2266 = vst [vmem:[%s542 + $0x98] sm:$0xff] %v2246
        %s2267 = sand.u32 %s401, 1
        %s2268 = scalar_lea.sflag [#allocation3], %s2267
        %s2269 = sand.u32 %s401, 1
        %s2270 = smul.addr %s2269, 160
        %s2271 = scalar_lea.vmem [#allocation2], %s2270
        // Predicated region
        $region89: #{tpu_custom_call.1} parent=87 // pred_check
          %p2272 = pneg %p411
        $region90: #{tpu_custom_call.1} parent=87 // pred_check_branch
          %2274 = sbr.rel (%p2272) target = $region92
        $region91: #{tpu_custom_call.1} parent=87 // pred_region
          %s2275 = smul.u32 20, %s31
          %s2277 = ssub.s32 2560, 2560
          %2278 = vsyncadd %s2268, %s2277
          %s2279 = smul.addr %s2275, 128
          %s2280 = scalar_lea.hbm %s17, %s2279
          %s2281 = sshll.u32 %s2271, 4
          %s2282 = int_to_ptr.vmem [resolvable:$true] %s2281
          %2287 = dma.vmem_to_hbm [thread:$0]  %s2282, 2560, %s2280, %s2268, 128, 128, 8
        $region92: #{tpu_custom_call.1} parent=87 // pred_fallthru
          _
      $region88: #{tpu_custom_call.1} parent=5 // pred_fallthru
        _
      %p2288 = scmp.le.s32.totalorder 2, %s26
      // Predicated region
      $region93: #{tpu_custom_call.1} parent=5 // pred_check
        %p2289 = pneg %p2288
      $region94: #{tpu_custom_call.1} parent=5 // pred_check_branch
        %2291 = sbr.rel (%p2289) target = $region96
      $region95: #{tpu_custom_call.1} parent=5 // pred_region
        %s2292 = ssub.s32 %s26, 2
        // Predicated region
        $region97: #{tpu_custom_call.1} parent=95 // pred_check
          %p2293 = pneg %p417
        $region98: #{tpu_custom_call.1} parent=95 // pred_check_branch
          %2295 = sbr.rel (%p2293) target = $region100
        $region99: #{tpu_custom_call.1} parent=95 // pred_region
          %s2296 = sand.u32 %s402, 1
          %s2297 = scalar_lea.sflag [#allocation3], %s2296
          %s2298 = sand.u32 %s402, 1
          %s2299 = smul.addr %s2298, 160
          %s2300 = scalar_lea.vmem [#allocation2], %s2299
          %2301 = dma.done %s2297, 2560
        $region100: #{tpu_custom_call.1} parent=95 // pred_fallthru
          _
      $region96: #{tpu_custom_call.1} parent=5 // pred_fallthru
        _
    $region6: #{tpu_custom_call.1} parent=1 // loop_footer
      %s30 = sadd.s32 1, %s26
    $region7: #{tpu_custom_call.1} parent=1 // loop_footer_branch
      %25 = sbr.rel target = $region3
    $region8: #{tpu_custom_call.1} parent=1 // loop_exit
      _
    %2302 = vsyncpa [#allocation3], 1
    %s2303 = scalar_lea.sflag [#allocation3], 1
    %2304 = vsyncpa %s2303, 1

</llo_original>
